<compile_context>
chip_gen: v6e
topology: v6e:2x2x1
jax: 0.10.0
libtpu: 0.0.40
codegen_flags: <defaults>
</compile_context>

<pallas_src>
import math

import jax
import jax.numpy as jnp
from jax.experimental import pallas as pl
from jax.experimental.pallas import tpu as pltpu


def _round_up(v, m):
    return (v + m - 1) // m * m


def _device_kind():
    try:
        return jax.devices()[0].device_kind.lower()
    except Exception:
        return "unknown"


# Below this many MACs the pallas_call fixed cost dominates -> use plain jnp.dot.
_FAST_PATH_MACS = 1 << 21


def _select_tile_config(K, N):
    """Generation-aware tile sizes for x(M,K) @ W^T(K,N)."""
    kind = _device_kind()
    if "v6" in kind:
        # 918 TF/s bf16 vs ~1.4 TB/s HBM -> need tm*tn/(tm+tn) >~ 650 to be MXU-bound.
        tm_max, tn_max, tk_max = 1024, 2048, 512
        vmem_limit = 96 * 1024 * 1024   # buffers ~24-28 MiB; default 32 MiB scoped limit is tight
    elif "v7" in kind:
        # 64 MiB VMEM / TC, 3.2 TB/s HBM: 512x1024 is already compute-bound (~10 MiB buffers).
        tm_max, tn_max, tk_max = 512, 1024, 512
        vmem_limit = None
    else:
        # v5e (and safe default): 512x512 crosses the ~240 roofline threshold, ~5 MiB buffers.
        tm_max, tn_max, tk_max = 512, 512, 512
        vmem_limit = None

    tk = tk_max if K >= tk_max else _round_up(K, 128)
    tn = tn_max if N >= tn_max else _round_up(N, 128)

    # v7x megacore: prefer >=2 blocks along the (parallel) N axis so both TensorCores
    # get work even when M fits in a single tile.
    if "v7" in kind and N > 128:
        tn = min(tn, _round_up((N + 1) // 2, 128))

    return dict(tm_max=tm_max, tn=tn, tk=tk, vmem_limit=vmem_limit)


def _matmul_kernel(x_ref, wt_ref, o_ref):
    # grid = (M tiles, N tiles, K tiles); K innermost (reduction) axis.
    @pl.when(pl.program_id(2) == 0)
    def _():
        o_ref[...] = jnp.zeros_like(o_ref)

    # x arrives f32; cast to bf16 in-kernel (the VPU cast hides under the MXU).
    o_ref[...] += jnp.dot(
        x_ref[...].astype(jnp.bfloat16),
        wt_ref[...],
        preferred_element_type=jnp.float32,
    )


def linear_pallas(x, wtp, n_out, *, tm_max, tn, tk, vmem_limit=None):
    """Computes x(M,K) @ W^T where wtp is the pre-padded bf16 weight (Kp, Np).

    Returns (M, n_out) float32.
    """
    M, K = x.shape
    Kp, Np = wtp.shape
    assert Kp % tk == 0 and Np % tn == 0 and Kp >= K

    # bf16 packs 16 rows per sublane group -> round the M tile to 16.
    tm = tm_max if M >= tm_max else _round_up(M, 16)
    Mp = _round_up(M, tm)

    if (Mp, Kp) != (M, K):
        x = jnp.pad(x, ((0, Mp - M), (0, Kp - K)))

    grid = (Mp // tm, Np // tn, Kp // tk)

    out = pl.pallas_call(
        _matmul_kernel,
        out_shape=jax.ShapeDtypeStruct((Mp, Np), jnp.float32),
        grid=grid,
        in_specs=[
            pl.BlockSpec((tm, tk), lambda i, j, k: (i, k)),  # x tile (f32)
            pl.BlockSpec((tk, tn), lambda i, j, k: (k, j)),  # W^T tile (bf16, streamed)
        ],
        out_specs=pl.BlockSpec((tm, tn), lambda i, j, k: (i, j)),
        compiler_params=pltpu.CompilerParams(
            dimension_semantics=("parallel", "parallel", "arbitrary"),
            vmem_limit_bytes=vmem_limit,
        ),
    )(x, wtp)

    if (Mp, Np) == (M, n_out):
        return out
    return out[:M, :n_out]


class CustomFullyConnectedLayerPallas:
    def __init__(self, in_features, out_features, *, sparsity=0.1, key):
        self.in_features = in_features
        self.out_features = out_features
        self.total_permutations = max(in_features, out_features)
        self.diag_length = min(in_features, out_features)
        num_params = in_features * out_features
        req_params = int((1 - sparsity) * num_params)
        self.K = math.ceil(req_params / self.diag_length)

        # nn.init.kaiming_uniform_(V, a=sqrt(5)) on (total_permutations, diag_length)
        # => U(-1/sqrt(fan_in), 1/sqrt(fan_in)), fan_in = diag_length.
        bound = 1.0 / math.sqrt(self.diag_length)
        self.V = jax.random.uniform(
            key, (self.total_permutations, self.diag_length), dtype=jnp.float32,
            minval=-bound, maxval=bound,
        )
        # nn.init.constant_(alpha, 1/in_features)
        self.alpha = jnp.full(
            (self.total_permutations,), 1.0 / in_features, dtype=jnp.float32
        )

        self._tiles = _select_tile_config(in_features, out_features)
        self._wt_bf16 = None   # (K, N)   bf16, for the small-shape fast path
        self._wtp_bf16 = None  # (Kp, Np) bf16, pre-padded for the Pallas path

    # -- weight assembly -------------------------------------------------------

    def _alpha_topk(self):
        # TODO(synk): the original uses sparse_soft_topk_mask_dykstra (soft top-k);
        # approximated here by a hard top-K {0,1} mask.  With alpha initialized to a
        # constant every entry ties, so the selected K diagonals are an arbitrary
        # (but deterministic) subset.
        _, idx = jax.lax.top_k(self.alpha, self.K)
        return jnp.zeros_like(self.alpha).at[idx].set(1.0)

    def compute_weights(self):
        """Dense W (out_features, in_features), matching nn.Linear weight layout."""
        a = self._alpha_topk()
        out_f, in_f = self.out_features, self.in_features
        rows = jnp.arange(out_f)[:, None]
        cols = jnp.arange(in_f)[None, :]
        if out_f > in_f:
            diag_idx = jnp.mod(rows - cols, out_f)
            W = a[diag_idx] * self.V[diag_idx, cols]
        else:
            diag_idx = jnp.mod(cols - rows, in_f)
            W = a[diag_idx] * self.V[diag_idx, rows]
        return W.astype(jnp.float32)

    def compute_weights_transposed(self):
        """W^T (in_features, out_features), built directly -- no transpose pass."""
        a = self._alpha_topk()
        out_f, in_f = self.out_features, self.in_features
        c_idx = jnp.arange(in_f)[:, None]   # input-feature index (rows of W^T)
        r_idx = jnp.arange(out_f)[None, :]  # output-feature index (cols of W^T)
        if out_f > in_f:
            diag_idx = jnp.mod(r_idx - c_idx, out_f)
            WT = a[diag_idx] * self.V[diag_idx, c_idx]
        else:
            diag_idx = jnp.mod(c_idx - r_idx, in_f)
            WT = a[diag_idx] * self.V[diag_idx, r_idx]
        return WT.astype(jnp.float32)

    # -- weight cache ----------------------------------------------------------

    def invalidate_cache(self):
        """Call after updating V / alpha so the next forward rebuilds W^T."""
        self._wt_bf16 = None
        self._wtp_bf16 = None

    def _ensure_cache(self):
        if self._wtp_bf16 is not None:
            return
        wt = self.compute_weights_transposed()          # (K, N) f32
        wt_bf16 = wt.astype(jnp.bfloat16)
        k_dim, n_dim = wt_bf16.shape
        tk, tn = self._tiles["tk"], self._tiles["tn"]
        kp, np_ = _round_up(k_dim, tk), _round_up(n_dim, tn)
        wtp = wt_bf16 if (kp, np_) == (k_dim, n_dim) else jnp.pad(
            wt_bf16, ((0, kp - k_dim), (0, np_ - n_dim)))
        self._wt_bf16 = wt_bf16
        self._wtp_bf16 = wtp

    # -- forward ---------------------------------------------------------------

    def __call__(self, x):
        # NOTE: x and W hit the MXU in bf16 with an f32 accumulator; relative error
        # grows roughly with sqrt(in_features) * 2^-8 -- a deliberate speed tradeoff.
        self._ensure_cache()
        lead = x.shape[:-1]
        x2 = x.reshape((-1, self.in_features))
        M = x2.shape[0]

        if M * self.in_features * self.out_features <= _FAST_PATH_MACS:
            # Tiny problem: the pallas_call fixed cost dominates -> fused XLA dot.
            out = jnp.dot(
                x2.astype(jnp.bfloat16), self._wt_bf16,
                preferred_element_type=jnp.float32,
            )
        else:
            t = self._tiles
            out = linear_pallas(
                x2, self._wtp_bf16, self.out_features,
                tm_max=t["tm_max"], tn=t["tn"], tk=t["tk"],
                vmem_limit=t["vmem_limit"],
            )
        return out.reshape(lead + (self.out_features,))


if __name__ == "__main__":
    key = jax.random.PRNGKey(0)
    k1, k2, k3, k4 = jax.random.split(key, 4)

    # --- 1) tiny layer: matches the PyTorch driver's scale, exercises the fast path ---
    in_f, out_f, batch = 48, 32, 16
    layer_small = CustomFullyConnectedLayerPallas(in_f, out_f, sparsity=0.1, key=k1)
    x_small = jax.random.normal(k2, (batch, in_f), dtype=jnp.float32)
    out_small = jax.block_until_ready(layer_small(x_small))
    assert out_small.shape == (batch, out_f)
    ref_small = x_small @ layer_small.compute_weights().T
    assert jnp.allclose(out_small, ref_small, atol=5e-2, rtol=5e-2)

    # --- 2) larger layer: forces the Pallas matmul path (still small/fast to run) ---
    in_f2, out_f2, batch2 = 384, 512, 256   # 256*384*512 ~= 50M MACs > fast-path cutoff
    layer_big = CustomFullyConnectedLayerPallas(in_f2, out_f2, sparsity=0.1, key=k3)
    x_big = jax.random.normal(k4, (batch2, in_f2), dtype=jnp.float32)
    out_big = jax.block_until_ready(layer_big(x_big))
    assert out_big.shape == (batch2, out_f2)

    # W^T built directly must equal W transposed.
    W = layer_big.compute_weights()
    WT = layer_big.compute_weights_transposed()
    assert jnp.allclose(WT, W.T)

    # Sanity check 1: bf16-input / f32-accumulate reference (same formula as the kernel).
    ref_bf16 = jnp.dot(
        x_big.astype(jnp.bfloat16), WT.astype(jnp.bfloat16),
        preferred_element_type=jnp.float32,
    )
    assert jnp.allclose(out_big, ref_bf16, atol=2e-3, rtol=2e-3)

    # Sanity check 2: full-precision reference of the module's forward pass.
    ref_f32 = x_big @ W.T
    assert jnp.allclose(out_big, ref_f32, atol=5e-2, rtol=5e-2)

    print("KERNEL_OK")
</pallas_src>

<mosaic_0001>
module attributes {stable_mosaic.version = 11 : i64} {
  func.func @_matmul_kernel(%arg0: i32, %arg1: i32, %arg2: i32, %arg3: memref<256x384xf32, #tpu.memory_space<vmem>>, %arg4: memref<384x512xbf16, #tpu.memory_space<vmem>>, %arg5: memref<256x512xf32, #tpu.memory_space<vmem>>) attributes {dimension_semantics = [#tpu.dimension_semantics<parallel>, #tpu.dimension_semantics<parallel>, #tpu.dimension_semantics<arbitrary>], iteration_bounds = array<i64: 1, 1, 1>, scalar_prefetch = 0 : i64, scratch_operands = 0 : i64, tpu.core_type = #tpu.core_type<tc>, window_params = [{transform_indices = @transform_0, window_bounds = array<i64: 256, 384>}, {transform_indices = @transform_1, window_bounds = array<i64: 384, 512>}, {transform_indices = @transform_2, window_bounds = array<i64: 256, 512>}]} {
    %c0_i32 = arith.constant 0 : i32
    %0 = arith.cmpi eq, %arg2, %c0_i32 : i32
    %1 = arith.extui %0 : i1 to i32
    %c0_i32_0 = arith.constant 0 : i32
    %2 = arith.cmpi ne, %1, %c0_i32_0 : i32
    scf.if %2 {
      %cst_8 = arith.constant 0.000000e+00 : f32
      %10 = vector.broadcast %cst_8 : f32 to vector<256x512xf32>
      %c0_9 = arith.constant 0 : index
      %c0_10 = arith.constant 0 : index
      %11 = vector.load %arg5[%c0_9, %c0_10] : memref<256x512xf32, #tpu.memory_space<vmem>>, vector<256x512xf32>
      tpu.vector_store %arg5[%c0_9, %c0_10], %10 {strides = array<i32>} : memref<256x512xf32, #tpu.memory_space<vmem>>, vector<256x512xf32>,
    } else {
    }
    %c0 = arith.constant 0 : index
    %c0_1 = arith.constant 0 : index
    %3 = vector.load %arg5[%c0, %c0_1] : memref<256x512xf32, #tpu.memory_space<vmem>>, vector<256x512xf32>
    %c0_2 = arith.constant 0 : index
    %c0_3 = arith.constant 0 : index
    %4 = vector.load %arg3[%c0_2, %c0_3] : memref<256x384xf32, #tpu.memory_space<vmem>>, vector<256x384xf32>
    %5 = arith.truncf %4 : vector<256x384xf32> to vector<256x384xbf16>
    %c0_4 = arith.constant 0 : index
    %c0_5 = arith.constant 0 : index
    %6 = vector.load %arg4[%c0_4, %c0_5] : memref<384x512xbf16, #tpu.memory_space<vmem>>, vector<384x512xbf16>
    %cst = arith.constant dense<0.000000e+00> : vector<256x512xf32>
    %7 = tpu.matmul %5, %6, %cst {dimension_numbers = #tpu.dot_dimension_numbers<[1], [0], [0], [1], [0, 0, 1, 1], [], []>} : vector<256x384xbf16>, vector<384x512xbf16>, vector<256x512xf32> -> vector<256x512xf32>
    %8 = arith.addf %3, %7 : vector<256x512xf32>
    %c0_6 = arith.constant 0 : index
    %c0_7 = arith.constant 0 : index
    %9 = vector.load %arg5[%c0_6, %c0_7] : memref<256x512xf32, #tpu.memory_space<vmem>>, vector<256x512xf32>
    tpu.vector_store %arg5[%c0_6, %c0_7], %8 {strides = array<i32>} : memref<256x512xf32, #tpu.memory_space<vmem>>, vector<256x512xf32>,
    return
  }
  func.func @transform_0(%arg0: i32, %arg1: i32, %arg2: i32) -> (i32, i32) {
    %c0_i32 = arith.constant 0 : i32
    return %arg0, %arg2 : i32, i32
  }
  func.func @transform_1(%arg0: i32, %arg1: i32, %arg2: i32) -> (i32, i32) {
    %c0_i32 = arith.constant 0 : i32
    return %arg2, %arg1 : i32, i32
  }
  func.func @transform_2(%arg0: i32, %arg1: i32, %arg2: i32) -> (i32, i32) {
    %c0_i32 = arith.constant 0 : i32
    return %arg0, %arg1 : i32, i32
  }
}

</mosaic_0001>

<llo_original>
// kernel: tpu_custom_call.1
$region0: #{tpu_custom_call.1}
  #allocation0 [shape = 'u32[]', space=smem, size = 0x4, offset = 0x4, fixed_abs, tag = 'smem constant byte address 0x4 - core index']
  #allocation1 [shape = 'u32[144,128]{1,0:T(1,128)}', space=vmem, size = 0x12000, scoped, tag = 'internal scratch']
  %s0 = inlined_call_operand.hbm [shape: f32[256,384], index: 0, kind: input, shape index: {}]
  %s1 = inlined_call_operand.hbm [shape: bf16[384,512], index: 1, kind: input, shape index: {}]
  %s2 = inlined_call_operand.hbm [shape: f32[256,512], index: 2, kind: output, shape index: {}]
  %s3 = sld [smem:[#allocation0]]
  $region30: #{tpu_custom_call.1} parent=0
    _
  %s5 = ssub.s32 1, %s3
  %s6 = scalar_select 0, %s5, %s3
  $region1: #{tpu_custom_call.1} parent=0
    #allocation2 [shape = 'u8[393216]{0}', space=vmem, size = 0x60000, scoped, tag = 'input window, operand 0, single buffered']
    #allocation3 [shape = 's32[1]{0}', space=sflag, size = 0x4, scoped, tag = 'scoped memory for tpu_custom_call.1']
    #allocation4 [shape = 's32[1]{0}', space=sflag, size = 0x4, scoped, tag = 'scoped memory for tpu_custom_call.1']
    #allocation5 [shape = 'u8[393216]{0}', space=vmem, size = 0x60000, scoped, tag = 'input window, operand 1, single buffered']
    #allocation6 [shape = 's32[1]{0}', space=sflag, size = 0x4, scoped, tag = 'scoped memory for tpu_custom_call.1']
    #allocation7 [shape = 'u8[524288]{0}', space=vmem, size = 0x80000, scoped, tag = 'output window, operand 0, single buffered']
    %7 = vsyncpa [#allocation3], 0
    %8 = vsyncpa [#allocation6], 0
    %9 = vsyncpa [#allocation4], 0
    // Predicated region
    $region2: #{tpu_custom_call.1} parent=1 // pred_check
      _
    $region3: #{tpu_custom_call.1} parent=1 // pred_check_branch
      %11 = sbr.rel (0) target = $region5
    $region4: #{tpu_custom_call.1} parent=1 // pred_region
      %s13 = ssub.s32 12288, 12288
      %14 = vsyncadd [#allocation3], %s13
      %s15 = sshll.u32 [#allocation2], 4
      %s16 = int_to_ptr.vmem [resolvable:$true] %s15
      %21 = dma.hbm_to_vmem [thread:$0]  %s0, 12288, %s16, [#allocation3], 384, 384, 24
    $region5: #{tpu_custom_call.1} parent=1 // pred_fallthru
      _
    // Predicated region
    $region6: #{tpu_custom_call.1} parent=1 // pred_check
      _
    $region7: #{tpu_custom_call.1} parent=1 // pred_check_branch
      %23 = sbr.rel (0) target = $region9
    $region8: #{tpu_custom_call.1} parent=1 // pred_region
      %s25 = ssub.s32 12288, 12288
      %26 = vsyncadd [#allocation6], %s25
      %s27 = sshll.u32 [#allocation5], 4
      %s28 = int_to_ptr.vmem [resolvable:$true] %s27
      %33 = dma.hbm_to_vmem [thread:$0]  %s1, 12288, %s28, [#allocation6], 256, 256, 16
    $region9: #{tpu_custom_call.1} parent=1 // pred_fallthru
      _
    // Predicated region
    $region10: #{tpu_custom_call.1} parent=1 // pred_check
      _
    $region11: #{tpu_custom_call.1} parent=1 // pred_check_branch
      %35 = sbr.rel (0) target = $region13
    $region12: #{tpu_custom_call.1} parent=1 // pred_region
      %36 = dma.done [#allocation3], 12288
    $region13: #{tpu_custom_call.1} parent=1 // pred_fallthru
      _
    // Predicated region
    $region14: #{tpu_custom_call.1} parent=1 // pred_check
      _
    $region15: #{tpu_custom_call.1} parent=1 // pred_check_branch
      %38 = sbr.rel (0) target = $region17
    $region16: #{tpu_custom_call.1} parent=1 // pred_region
      %39 = dma.done [#allocation6], 12288
    $region17: #{tpu_custom_call.1} parent=1 // pred_fallthru
      _
    %p41 = scmp.eq.s32.totalorder 0, 0
    // Predicated region
    $region18: #{tpu_custom_call.1} parent=1 // pred_check
      %p42 = pneg %p41
    $region19: #{tpu_custom_call.1} parent=1 // pred_check_branch
      %44 = sbr.rel (%p42) target = $region21
    $region20: #{tpu_custom_call.1} parent=1 // pred_region
      %45 = vst [vmem:[#allocation7] sm:$0xff] 0.0
      %46 = vst [vmem:[#allocation7 + $0x8] sm:$0xff] 0.0
      %47 = vst [vmem:[#allocation7 + $0x10] sm:$0xff] 0.0
      %48 = vst [vmem:[#allocation7 + $0x18] sm:$0xff] 0.0
      %49 = vst [vmem:[#allocation7 + $0x20] sm:$0xff] 0.0
      %50 = vst [vmem:[#allocation7 + $0x28] sm:$0xff] 0.0
      %51 = vst [vmem:[#allocation7 + $0x30] sm:$0xff] 0.0
      %52 = vst [vmem:[#allocation7 + $0x38] sm:$0xff] 0.0
      %53 = vst [vmem:[#allocation7 + $0x40] sm:$0xff] 0.0
      %54 = vst [vmem:[#allocation7 + $0x48] sm:$0xff] 0.0
      %55 = vst [vmem:[#allocation7 + $0x50] sm:$0xff] 0.0
      %56 = vst [vmem:[#allocation7 + $0x58] sm:$0xff] 0.0
      %57 = vst [vmem:[#allocation7 + $0x60] sm:$0xff] 0.0
      %58 = vst [vmem:[#allocation7 + $0x68] sm:$0xff] 0.0
      %59 = vst [vmem:[#allocation7 + $0x70] sm:$0xff] 0.0
      %60 = vst [vmem:[#allocation7 + $0x78] sm:$0xff] 0.0
      %61 = vst [vmem:[#allocation7 + $0x80] sm:$0xff] 0.0
      %62 = vst [vmem:[#allocation7 + $0x88] sm:$0xff] 0.0
      %63 = vst [vmem:[#allocation7 + $0x90] sm:$0xff] 0.0
      %64 = vst [vmem:[#allocation7 + $0x98] sm:$0xff] 0.0
      %65 = vst [vmem:[#allocation7 + $0xa0] sm:$0xff] 0.0
      %66 = vst [vmem:[#allocation7 + $0xa8] sm:$0xff] 0.0
      %67 = vst [vmem:[#allocation7 + $0xb0] sm:$0xff] 0.0
      %68 = vst [vmem:[#allocation7 + $0xb8] sm:$0xff] 0.0
      %69 = vst [vmem:[#allocation7 + $0xc0] sm:$0xff] 0.0
      %70 = vst [vmem:[#allocation7 + $0xc8] sm:$0xff] 0.0
      %71 = vst [vmem:[#allocation7 + $0xd0] sm:$0xff] 0.0
      %72 = vst [vmem:[#allocation7 + $0xd8] sm:$0xff] 0.0
      %73 = vst [vmem:[#allocation7 + $0xe0] sm:$0xff] 0.0
      %74 = vst [vmem:[#allocation7 + $0xe8] sm:$0xff] 0.0
      %75 = vst [vmem:[#allocation7 + $0xf0] sm:$0xff] 0.0
      %76 = vst [vmem:[#allocation7 + $0xf8] sm:$0xff] 0.0
      %77 = vst [vmem:[#allocation7 + $0x100] sm:$0xff] 0.0
      %78 = vst [vmem:[#allocation7 + $0x108] sm:$0xff] 0.0
      %79 = vst [vmem:[#allocation7 + $0x110] sm:$0xff] 0.0
      %80 = vst [vmem:[#allocation7 + $0x118] sm:$0xff] 0.0
      %81 = vst [vmem:[#allocation7 + $0x120] sm:$0xff] 0.0
      %82 = vst [vmem:[#allocation7 + $0x128] sm:$0xff] 0.0
      %83 = vst [vmem:[#allocation7 + $0x130] sm:$0xff] 0.0
      %84 = vst [vmem:[#allocation7 + $0x138] sm:$0xff] 0.0
      %85 = vst [vmem:[#allocation7 + $0x140] sm:$0xff] 0.0
      %86 = vst [vmem:[#allocation7 + $0x148] sm:$0xff] 0.0
      %87 = vst [vmem:[#allocation7 + $0x150] sm:$0xff] 0.0
      %88 = vst [vmem:[#allocation7 + $0x158] sm:$0xff] 0.0
      %89 = vst [vmem:[#allocation7 + $0x160] sm:$0xff] 0.0
      %90 = vst [vmem:[#allocation7 + $0x168] sm:$0xff] 0.0
      %91 = vst [vmem:[#allocation7 + $0x170] sm:$0xff] 0.0
      %92 = vst [vmem:[#allocation7 + $0x178] sm:$0xff] 0.0
      %93 = vst [vmem:[#allocation7 + $0x180] sm:$0xff] 0.0
      %94 = vst [vmem:[#allocation7 + $0x188] sm:$0xff] 0.0
      %95 = vst [vmem:[#allocation7 + $0x190] sm:$0xff] 0.0
      %96 = vst [vmem:[#allocation7 + $0x198] sm:$0xff] 0.0
      %97 = vst [vmem:[#allocation7 + $0x1a0] sm:$0xff] 0.0
      %98 = vst [vmem:[#allocation7 + $0x1a8] sm:$0xff] 0.0
      %99 = vst [vmem:[#allocation7 + $0x1b0] sm:$0xff] 0.0
      %100 = vst [vmem:[#allocation7 + $0x1b8] sm:$0xff] 0.0
      %101 = vst [vmem:[#allocation7 + $0x1c0] sm:$0xff] 0.0
      %102 = vst [vmem:[#allocation7 + $0x1c8] sm:$0xff] 0.0
      %103 = vst [vmem:[#allocation7 + $0x1d0] sm:$0xff] 0.0
      %104 = vst [vmem:[#allocation7 + $0x1d8] sm:$0xff] 0.0
      %105 = vst [vmem:[#allocation7 + $0x1e0] sm:$0xff] 0.0
      %106 = vst [vmem:[#allocation7 + $0x1e8] sm:$0xff] 0.0
      %107 = vst [vmem:[#allocation7 + $0x1f0] sm:$0xff] 0.0
      %108 = vst [vmem:[#allocation7 + $0x1f8] sm:$0xff] 0.0
      %109 = vst [vmem:[#allocation7 + $0x200] sm:$0xff] 0.0
      %110 = vst [vmem:[#allocation7 + $0x208] sm:$0xff] 0.0
      %111 = vst [vmem:[#allocation7 + $0x210] sm:$0xff] 0.0
      %112 = vst [vmem:[#allocation7 + $0x218] sm:$0xff] 0.0
      %113 = vst [vmem:[#allocation7 + $0x220] sm:$0xff] 0.0
      %114 = vst [vmem:[#allocation7 + $0x228] sm:$0xff] 0.0
      %115 = vst [vmem:[#allocation7 + $0x230] sm:$0xff] 0.0
      %116 = vst [vmem:[#allocation7 + $0x238] sm:$0xff] 0.0
      %117 = vst [vmem:[#allocation7 + $0x240] sm:$0xff] 0.0
      %118 = vst [vmem:[#allocation7 + $0x248] sm:$0xff] 0.0
      %119 = vst [vmem:[#allocation7 + $0x250] sm:$0xff] 0.0
      %120 = vst [vmem:[#allocation7 + $0x258] sm:$0xff] 0.0
      %121 = vst [vmem:[#allocation7 + $0x260] sm:$0xff] 0.0
      %122 = vst [vmem:[#allocation7 + $0x268] sm:$0xff] 0.0
      %123 = vst [vmem:[#allocation7 + $0x270] sm:$0xff] 0.0
      %124 = vst [vmem:[#allocation7 + $0x278] sm:$0xff] 0.0
      %125 = vst [vmem:[#allocation7 + $0x280] sm:$0xff] 0.0
      %126 = vst [vmem:[#allocation7 + $0x288] sm:$0xff] 0.0
      %127 = vst [vmem:[#allocation7 + $0x290] sm:$0xff] 0.0
      %128 = vst [vmem:[#allocation7 + $0x298] sm:$0xff] 0.0
      %129 = vst [vmem:[#allocation7 + $0x2a0] sm:$0xff] 0.0
      %130 = vst [vmem:[#allocation7 + $0x2a8] sm:$0xff] 0.0
      %131 = vst [vmem:[#allocation7 + $0x2b0] sm:$0xff] 0.0
      %132 = vst [vmem:[#allocation7 + $0x2b8] sm:$0xff] 0.0
      %133 = vst [vmem:[#allocation7 + $0x2c0] sm:$0xff] 0.0
      %134 = vst [vmem:[#allocation7 + $0x2c8] sm:$0xff] 0.0
      %135 = vst [vmem:[#allocation7 + $0x2d0] sm:$0xff] 0.0
      %136 = vst [vmem:[#allocation7 + $0x2d8] sm:$0xff] 0.0
      %137 = vst [vmem:[#allocation7 + $0x2e0] sm:$0xff] 0.0
      %138 = vst [vmem:[#allocation7 + $0x2e8] sm:$0xff] 0.0
      %139 = vst [vmem:[#allocation7 + $0x2f0] sm:$0xff] 0.0
      %140 = vst [vmem:[#allocation7 + $0x2f8] sm:$0xff] 0.0
      %141 = vst [vmem:[#allocation7 + $0x300] sm:$0xff] 0.0
      %142 = vst [vmem:[#allocation7 + $0x308] sm:$0xff] 0.0
      %143 = vst [vmem:[#allocation7 + $0x310] sm:$0xff] 0.0
      %144 = vst [vmem:[#allocation7 + $0x318] sm:$0xff] 0.0
      %145 = vst [vmem:[#allocation7 + $0x320] sm:$0xff] 0.0
      %146 = vst [vmem:[#allocation7 + $0x328] sm:$0xff] 0.0
      %147 = vst [vmem:[#allocation7 + $0x330] sm:$0xff] 0.0
      %148 = vst [vmem:[#allocation7 + $0x338] sm:$0xff] 0.0
      %149 = vst [vmem:[#allocation7 + $0x340] sm:$0xff] 0.0
      %150 = vst [vmem:[#allocation7 + $0x348] sm:$0xff] 0.0
      %151 = vst [vmem:[#allocation7 + $0x350] sm:$0xff] 0.0
      %152 = vst [vmem:[#allocation7 + $0x358] sm:$0xff] 0.0
      %153 = vst [vmem:[#allocation7 + $0x360] sm:$0xff] 0.0
      %154 = vst [vmem:[#allocation7 + $0x368] sm:$0xff] 0.0
      %155 = vst [vmem:[#allocation7 + $0x370] sm:$0xff] 0.0
      %156 = vst [vmem:[#allocation7 + $0x378] sm:$0xff] 0.0
      %157 = vst [vmem:[#allocation7 + $0x380] sm:$0xff] 0.0
      %158 = vst [vmem:[#allocation7 + $0x388] sm:$0xff] 0.0
      %159 = vst [vmem:[#allocation7 + $0x390] sm:$0xff] 0.0
      %160 = vst [vmem:[#allocation7 + $0x398] sm:$0xff] 0.0
      %161 = vst [vmem:[#allocation7 + $0x3a0] sm:$0xff] 0.0
      %162 = vst [vmem:[#allocation7 + $0x3a8] sm:$0xff] 0.0
      %163 = vst [vmem:[#allocation7 + $0x3b0] sm:$0xff] 0.0
      %164 = vst [vmem:[#allocation7 + $0x3b8] sm:$0xff] 0.0
      %165 = vst [vmem:[#allocation7 + $0x3c0] sm:$0xff] 0.0
      %166 = vst [vmem:[#allocation7 + $0x3c8] sm:$0xff] 0.0
      %167 = vst [vmem:[#allocation7 + $0x3d0] sm:$0xff] 0.0
      %168 = vst [vmem:[#allocation7 + $0x3d8] sm:$0xff] 0.0
      %169 = vst [vmem:[#allocation7 + $0x3e0] sm:$0xff] 0.0
      %170 = vst [vmem:[#allocation7 + $0x3e8] sm:$0xff] 0.0
      %171 = vst [vmem:[#allocation7 + $0x3f0] sm:$0xff] 0.0
      %172 = vst [vmem:[#allocation7 + $0x3f8] sm:$0xff] 0.0
    $region21: #{tpu_custom_call.1} parent=1 // pred_fallthru
      _
    %v173 = vld [vmem:[#allocation7] sm:$0xff]
    %v174 = vld [vmem:[#allocation7 + $0x8] sm:$0xff]
    %v175 = vld [vmem:[#allocation7 + $0x10] sm:$0xff]
    %v176 = vld [vmem:[#allocation7 + $0x18] sm:$0xff]
    %v177 = vld [vmem:[#allocation7 + $0x20] sm:$0xff]
    %v178 = vld [vmem:[#allocation7 + $0x28] sm:$0xff]
    %v179 = vld [vmem:[#allocation7 + $0x30] sm:$0xff]
    %v180 = vld [vmem:[#allocation7 + $0x38] sm:$0xff]
    %v181 = vld [vmem:[#allocation7 + $0x40] sm:$0xff]
    %v182 = vld [vmem:[#allocation7 + $0x48] sm:$0xff]
    %v183 = vld [vmem:[#allocation7 + $0x50] sm:$0xff]
    %v184 = vld [vmem:[#allocation7 + $0x58] sm:$0xff]
    %v185 = vld [vmem:[#allocation7 + $0x60] sm:$0xff]
    %v186 = vld [vmem:[#allocation7 + $0x68] sm:$0xff]
    %v187 = vld [vmem:[#allocation7 + $0x70] sm:$0xff]
    %v188 = vld [vmem:[#allocation7 + $0x78] sm:$0xff]
    %v189 = vld [vmem:[#allocation7 + $0x80] sm:$0xff]
    %v190 = vld [vmem:[#allocation7 + $0x88] sm:$0xff]
    %v191 = vld [vmem:[#allocation7 + $0x90] sm:$0xff]
    %v192 = vld [vmem:[#allocation7 + $0x98] sm:$0xff]
    %v193 = vld [vmem:[#allocation7 + $0xa0] sm:$0xff]
    %v194 = vld [vmem:[#allocation7 + $0xa8] sm:$0xff]
    %v195 = vld [vmem:[#allocation7 + $0xb0] sm:$0xff]
    %v196 = vld [vmem:[#allocation7 + $0xb8] sm:$0xff]
    %v197 = vld [vmem:[#allocation7 + $0xc0] sm:$0xff]
    %v198 = vld [vmem:[#allocation7 + $0xc8] sm:$0xff]
    %v199 = vld [vmem:[#allocation7 + $0xd0] sm:$0xff]
    %v200 = vld [vmem:[#allocation7 + $0xd8] sm:$0xff]
    %v201 = vld [vmem:[#allocation7 + $0xe0] sm:$0xff]
    %v202 = vld [vmem:[#allocation7 + $0xe8] sm:$0xff]
    %v203 = vld [vmem:[#allocation7 + $0xf0] sm:$0xff]
    %v204 = vld [vmem:[#allocation7 + $0xf8] sm:$0xff]
    %v205 = vld [vmem:[#allocation7 + $0x100] sm:$0xff]
    %v206 = vld [vmem:[#allocation7 + $0x108] sm:$0xff]
    %v207 = vld [vmem:[#allocation7 + $0x110] sm:$0xff]
    %v208 = vld [vmem:[#allocation7 + $0x118] sm:$0xff]
    %v209 = vld [vmem:[#allocation7 + $0x120] sm:$0xff]
    %v210 = vld [vmem:[#allocation7 + $0x128] sm:$0xff]
    %v211 = vld [vmem:[#allocation7 + $0x130] sm:$0xff]
    %v212 = vld [vmem:[#allocation7 + $0x138] sm:$0xff]
    %v213 = vld [vmem:[#allocation7 + $0x140] sm:$0xff]
    %v214 = vld [vmem:[#allocation7 + $0x148] sm:$0xff]
    %v215 = vld [vmem:[#allocation7 + $0x150] sm:$0xff]
    %v216 = vld [vmem:[#allocation7 + $0x158] sm:$0xff]
    %v217 = vld [vmem:[#allocation7 + $0x160] sm:$0xff]
    %v218 = vld [vmem:[#allocation7 + $0x168] sm:$0xff]
    %v219 = vld [vmem:[#allocation7 + $0x170] sm:$0xff]
    %v220 = vld [vmem:[#allocation7 + $0x178] sm:$0xff]
    %v221 = vld [vmem:[#allocation7 + $0x180] sm:$0xff]
    %v222 = vld [vmem:[#allocation7 + $0x188] sm:$0xff]
    %v223 = vld [vmem:[#allocation7 + $0x190] sm:$0xff]
    %v224 = vld [vmem:[#allocation7 + $0x198] sm:$0xff]
    %v225 = vld [vmem:[#allocation7 + $0x1a0] sm:$0xff]
    %v226 = vld [vmem:[#allocation7 + $0x1a8] sm:$0xff]
    %v227 = vld [vmem:[#allocation7 + $0x1b0] sm:$0xff]
    %v228 = vld [vmem:[#allocation7 + $0x1b8] sm:$0xff]
    %v229 = vld [vmem:[#allocation7 + $0x1c0] sm:$0xff]
    %v230 = vld [vmem:[#allocation7 + $0x1c8] sm:$0xff]
    %v231 = vld [vmem:[#allocation7 + $0x1d0] sm:$0xff]
    %v232 = vld [vmem:[#allocation7 + $0x1d8] sm:$0xff]
    %v233 = vld [vmem:[#allocation7 + $0x1e0] sm:$0xff]
    %v234 = vld [vmem:[#allocation7 + $0x1e8] sm:$0xff]
    %v235 = vld [vmem:[#allocation7 + $0x1f0] sm:$0xff]
    %v236 = vld [vmem:[#allocation7 + $0x1f8] sm:$0xff]
    %v237 = vld [vmem:[#allocation7 + $0x200] sm:$0xff]
    %v238 = vld [vmem:[#allocation7 + $0x208] sm:$0xff]
    %v239 = vld [vmem:[#allocation7 + $0x210] sm:$0xff]
    %v240 = vld [vmem:[#allocation7 + $0x218] sm:$0xff]
    %v241 = vld [vmem:[#allocation7 + $0x220] sm:$0xff]
    %v242 = vld [vmem:[#allocation7 + $0x228] sm:$0xff]
    %v243 = vld [vmem:[#allocation7 + $0x230] sm:$0xff]
    %v244 = vld [vmem:[#allocation7 + $0x238] sm:$0xff]
    %v245 = vld [vmem:[#allocation7 + $0x240] sm:$0xff]
    %v246 = vld [vmem:[#allocation7 + $0x248] sm:$0xff]
    %v247 = vld [vmem:[#allocation7 + $0x250] sm:$0xff]
    %v248 = vld [vmem:[#allocation7 + $0x258] sm:$0xff]
    %v249 = vld [vmem:[#allocation7 + $0x260] sm:$0xff]
    %v250 = vld [vmem:[#allocation7 + $0x268] sm:$0xff]
    %v251 = vld [vmem:[#allocation7 + $0x270] sm:$0xff]
    %v252 = vld [vmem:[#allocation7 + $0x278] sm:$0xff]
    %v253 = vld [vmem:[#allocation7 + $0x280] sm:$0xff]
    %v254 = vld [vmem:[#allocation7 + $0x288] sm:$0xff]
    %v255 = vld [vmem:[#allocation7 + $0x290] sm:$0xff]
    %v256 = vld [vmem:[#allocation7 + $0x298] sm:$0xff]
    %v257 = vld [vmem:[#allocation7 + $0x2a0] sm:$0xff]
    %v258 = vld [vmem:[#allocation7 + $0x2a8] sm:$0xff]
    %v259 = vld [vmem:[#allocation7 + $0x2b0] sm:$0xff]
    %v260 = vld [vmem:[#allocation7 + $0x2b8] sm:$0xff]
    %v261 = vld [vmem:[#allocation7 + $0x2c0] sm:$0xff]
    %v262 = vld [vmem:[#allocation7 + $0x2c8] sm:$0xff]
    %v263 = vld [vmem:[#allocation7 + $0x2d0] sm:$0xff]
    %v264 = vld [vmem:[#allocation7 + $0x2d8] sm:$0xff]
    %v265 = vld [vmem:[#allocation7 + $0x2e0] sm:$0xff]
    %v266 = vld [vmem:[#allocation7 + $0x2e8] sm:$0xff]
    %v267 = vld [vmem:[#allocation7 + $0x2f0] sm:$0xff]
    %v268 = vld [vmem:[#allocation7 + $0x2f8] sm:$0xff]
    %v269 = vld [vmem:[#allocation7 + $0x300] sm:$0xff]
    %v270 = vld [vmem:[#allocation7 + $0x308] sm:$0xff]
    %v271 = vld [vmem:[#allocation7 + $0x310] sm:$0xff]
    %v272 = vld [vmem:[#allocation7 + $0x318] sm:$0xff]
    %v273 = vld [vmem:[#allocation7 + $0x320] sm:$0xff]
    %v274 = vld [vmem:[#allocation7 + $0x328] sm:$0xff]
    %v275 = vld [vmem:[#allocation7 + $0x330] sm:$0xff]
    %v276 = vld [vmem:[#allocation7 + $0x338] sm:$0xff]
    %v277 = vld [vmem:[#allocation7 + $0x340] sm:$0xff]
    %v278 = vld [vmem:[#allocation7 + $0x348] sm:$0xff]
    %v279 = vld [vmem:[#allocation7 + $0x350] sm:$0xff]
    %v280 = vld [vmem:[#allocation7 + $0x358] sm:$0xff]
    %v281 = vld [vmem:[#allocation7 + $0x360] sm:$0xff]
    %v282 = vld [vmem:[#allocation7 + $0x368] sm:$0xff]
    %v283 = vld [vmem:[#allocation7 + $0x370] sm:$0xff]
    %v284 = vld [vmem:[#allocation7 + $0x378] sm:$0xff]
    %v285 = vld [vmem:[#allocation7 + $0x380] sm:$0xff]
    %v286 = vld [vmem:[#allocation7 + $0x388] sm:$0xff]
    %v287 = vld [vmem:[#allocation7 + $0x390] sm:$0xff]
    %v288 = vld [vmem:[#allocation7 + $0x398] sm:$0xff]
    %v289 = vld [vmem:[#allocation7 + $0x3a0] sm:$0xff]
    %v290 = vld [vmem:[#allocation7 + $0x3a8] sm:$0xff]
    %v291 = vld [vmem:[#allocation7 + $0x3b0] sm:$0xff]
    %v292 = vld [vmem:[#allocation7 + $0x3b8] sm:$0xff]
    %v293 = vld [vmem:[#allocation7 + $0x3c0] sm:$0xff]
    %v294 = vld [vmem:[#allocation7 + $0x3c8] sm:$0xff]
    %v295 = vld [vmem:[#allocation7 + $0x3d0] sm:$0xff]
    %v296 = vld [vmem:[#allocation7 + $0x3d8] sm:$0xff]
    %v297 = vld [vmem:[#allocation7 + $0x3e0] sm:$0xff]
    %v298 = vld [vmem:[#allocation7 + $0x3e8] sm:$0xff]
    %v299 = vld [vmem:[#allocation7 + $0x3f0] sm:$0xff]
    %v300 = vld [vmem:[#allocation7 + $0x3f8] sm:$0xff]
    %v301 = vld [vmem:[#allocation2] sm:$0xff]
    %v302 = vld [vmem:[#allocation2 + $0x8] sm:$0xff]
    %v303 = vld [vmem:[#allocation2 + $0x10] sm:$0xff]
    %v304 = vld [vmem:[#allocation2 + $0x18] sm:$0xff]
    %v305 = vld [vmem:[#allocation2 + $0x20] sm:$0xff]
    %v306 = vld [vmem:[#allocation2 + $0x28] sm:$0xff]
    %v307 = vld [vmem:[#allocation2 + $0x30] sm:$0xff]
    %v308 = vld [vmem:[#allocation2 + $0x38] sm:$0xff]
    %v309 = vld [vmem:[#allocation2 + $0x40] sm:$0xff]
    %v310 = vld [vmem:[#allocation2 + $0x48] sm:$0xff]
    %v311 = vld [vmem:[#allocation2 + $0x50] sm:$0xff]
    %v312 = vld [vmem:[#allocation2 + $0x58] sm:$0xff]
    %v313 = vld [vmem:[#allocation2 + $0x60] sm:$0xff]
    %v314 = vld [vmem:[#allocation2 + $0x68] sm:$0xff]
    %v315 = vld [vmem:[#allocation2 + $0x70] sm:$0xff]
    %v316 = vld [vmem:[#allocation2 + $0x78] sm:$0xff]
    %v317 = vld [vmem:[#allocation2 + $0x80] sm:$0xff]
    %v318 = vld [vmem:[#allocation2 + $0x88] sm:$0xff]
    %v319 = vld [vmem:[#allocation2 + $0x90] sm:$0xff]
    %v320 = vld [vmem:[#allocation2 + $0x98] sm:$0xff]
    %v321 = vld [vmem:[#allocation2 + $0xa0] sm:$0xff]
    %v322 = vld [vmem:[#allocation2 + $0xa8] sm:$0xff]
    %v323 = vld [vmem:[#allocation2 + $0xb0] sm:$0xff]
    %v324 = vld [vmem:[#allocation2 + $0xb8] sm:$0xff]
    %v325 = vld [vmem:[#allocation2 + $0xc0] sm:$0xff]
    %v326 = vld [vmem:[#allocation2 + $0xc8] sm:$0xff]
    %v327 = vld [vmem:[#allocation2 + $0xd0] sm:$0xff]
    %v328 = vld [vmem:[#allocation2 + $0xd8] sm:$0xff]
    %v329 = vld [vmem:[#allocation2 + $0xe0] sm:$0xff]
    %v330 = vld [vmem:[#allocation2 + $0xe8] sm:$0xff]
    %v331 = vld [vmem:[#allocation2 + $0xf0] sm:$0xff]
    %v332 = vld [vmem:[#allocation2 + $0xf8] sm:$0xff]
    %v333 = vld [vmem:[#allocation2 + $0x100] sm:$0xff]
    %v334 = vld [vmem:[#allocation2 + $0x108] sm:$0xff]
    %v335 = vld [vmem:[#allocation2 + $0x110] sm:$0xff]
    %v336 = vld [vmem:[#allocation2 + $0x118] sm:$0xff]
    %v337 = vld [vmem:[#allocation2 + $0x120] sm:$0xff]
    %v338 = vld [vmem:[#allocation2 + $0x128] sm:$0xff]
    %v339 = vld [vmem:[#allocation2 + $0x130] sm:$0xff]
    %v340 = vld [vmem:[#allocation2 + $0x138] sm:$0xff]
    %v341 = vld [vmem:[#allocation2 + $0x140] sm:$0xff]
    %v342 = vld [vmem:[#allocation2 + $0x148] sm:$0xff]
    %v343 = vld [vmem:[#allocation2 + $0x150] sm:$0xff]
    %v344 = vld [vmem:[#allocation2 + $0x158] sm:$0xff]
    %v345 = vld [vmem:[#allocation2 + $0x160] sm:$0xff]
    %v346 = vld [vmem:[#allocation2 + $0x168] sm:$0xff]
    %v347 = vld [vmem:[#allocation2 + $0x170] sm:$0xff]
    %v348 = vld [vmem:[#allocation2 + $0x178] sm:$0xff]
    %v349 = vld [vmem:[#allocation2 + $0x180] sm:$0xff]
    %v350 = vld [vmem:[#allocation2 + $0x188] sm:$0xff]
    %v351 = vld [vmem:[#allocation2 + $0x190] sm:$0xff]
    %v352 = vld [vmem:[#allocation2 + $0x198] sm:$0xff]
    %v353 = vld [vmem:[#allocation2 + $0x1a0] sm:$0xff]
    %v354 = vld [vmem:[#allocation2 + $0x1a8] sm:$0xff]
    %v355 = vld [vmem:[#allocation2 + $0x1b0] sm:$0xff]
    %v356 = vld [vmem:[#allocation2 + $0x1b8] sm:$0xff]
    %v357 = vld [vmem:[#allocation2 + $0x1c0] sm:$0xff]
    %v358 = vld [vmem:[#allocation2 + $0x1c8] sm:$0xff]
    %v359 = vld [vmem:[#allocation2 + $0x1d0] sm:$0xff]
    %v360 = vld [vmem:[#allocation2 + $0x1d8] sm:$0xff]
    %v361 = vld [vmem:[#allocation2 + $0x1e0] sm:$0xff]
    %v362 = vld [vmem:[#allocation2 + $0x1e8] sm:$0xff]
    %v363 = vld [vmem:[#allocation2 + $0x1f0] sm:$0xff]
    %v364 = vld [vmem:[#allocation2 + $0x1f8] sm:$0xff]
    %v365 = vld [vmem:[#allocation2 + $0x200] sm:$0xff]
    %v366 = vld [vmem:[#allocation2 + $0x208] sm:$0xff]
    %v367 = vld [vmem:[#allocation2 + $0x210] sm:$0xff]
    %v368 = vld [vmem:[#allocation2 + $0x218] sm:$0xff]
    %v369 = vld [vmem:[#allocation2 + $0x220] sm:$0xff]
    %v370 = vld [vmem:[#allocation2 + $0x228] sm:$0xff]
    %v371 = vld [vmem:[#allocation2 + $0x230] sm:$0xff]
    %v372 = vld [vmem:[#allocation2 + $0x238] sm:$0xff]
    %v373 = vld [vmem:[#allocation2 + $0x240] sm:$0xff]
    %v374 = vld [vmem:[#allocation2 + $0x248] sm:$0xff]
    %v375 = vld [vmem:[#allocation2 + $0x250] sm:$0xff]
    %v376 = vld [vmem:[#allocation2 + $0x258] sm:$0xff]
    %v377 = vld [vmem:[#allocation2 + $0x260] sm:$0xff]
    %v378 = vld [vmem:[#allocation2 + $0x268] sm:$0xff]
    %v379 = vld [vmem:[#allocation2 + $0x270] sm:$0xff]
    %v380 = vld [vmem:[#allocation2 + $0x278] sm:$0xff]
    %v381 = vld [vmem:[#allocation2 + $0x280] sm:$0xff]
    %v382 = vld [vmem:[#allocation2 + $0x288] sm:$0xff]
    %v383 = vld [vmem:[#allocation2 + $0x290] sm:$0xff]
    %v384 = vld [vmem:[#allocation2 + $0x298] sm:$0xff]
    %v385 = vld [vmem:[#allocation2 + $0x2a0] sm:$0xff]
    %v386 = vld [vmem:[#allocation2 + $0x2a8] sm:$0xff]
    %v387 = vld [vmem:[#allocation2 + $0x2b0] sm:$0xff]
    %v388 = vld [vmem:[#allocation2 + $0x2b8] sm:$0xff]
    %v389 = vld [vmem:[#allocation2 + $0x2c0] sm:$0xff]
    %v390 = vld [vmem:[#allocation2 + $0x2c8] sm:$0xff]
    %v391 = vld [vmem:[#allocation2 + $0x2d0] sm:$0xff]
    %v392 = vld [vmem:[#allocation2 + $0x2d8] sm:$0xff]
    %v393 = vld [vmem:[#allocation2 + $0x2e0] sm:$0xff]
    %v394 = vld [vmem:[#allocation2 + $0x2e8] sm:$0xff]
    %v395 = vld [vmem:[#allocation2 + $0x2f0] sm:$0xff]
    %v396 = vld [vmem:[#allocation2 + $0x2f8] sm:$0xff]
    %v397 = vpack.c.bf16 %v304, %v301
    %v398 = vpack.c.bf16 %v305, %v302
    %v399 = vpack.c.bf16 %v306, %v303
    %v400 = vpack.c.bf16 %v310, %v307
    %v401 = vpack.c.bf16 %v311, %v308
    %v402 = vpack.c.bf16 %v312, %v309
    %v403 = vpack.c.bf16 %v316, %v313
    %v404 = vpack.c.bf16 %v317, %v314
    %v405 = vpack.c.bf16 %v318, %v315
    %v406 = vpack.c.bf16 %v322, %v319
    %v407 = vpack.c.bf16 %v323, %v320
    %v408 = vpack.c.bf16 %v324, %v321
    %v409 = vpack.c.bf16 %v328, %v325
    %v410 = vpack.c.bf16 %v329, %v326
    %v411 = vpack.c.bf16 %v330, %v327
    %v412 = vpack.c.bf16 %v334, %v331
    %v413 = vpack.c.bf16 %v335, %v332
    %v414 = vpack.c.bf16 %v336, %v333
    %v415 = vpack.c.bf16 %v340, %v337
    %v416 = vpack.c.bf16 %v341, %v338
    %v417 = vpack.c.bf16 %v342, %v339
    %v418 = vpack.c.bf16 %v346, %v343
    %v419 = vpack.c.bf16 %v347, %v344
    %v420 = vpack.c.bf16 %v348, %v345
    %v421 = vpack.c.bf16 %v352, %v349
    %v422 = vpack.c.bf16 %v353, %v350
    %v423 = vpack.c.bf16 %v354, %v351
    %v424 = vpack.c.bf16 %v358, %v355
    %v425 = vpack.c.bf16 %v359, %v356
    %v426 = vpack.c.bf16 %v360, %v357
    %v427 = vpack.c.bf16 %v364, %v361
    %v428 = vpack.c.bf16 %v365, %v362
    %v429 = vpack.c.bf16 %v366, %v363
    %v430 = vpack.c.bf16 %v370, %v367
    %v431 = vpack.c.bf16 %v371, %v368
    %v432 = vpack.c.bf16 %v372, %v369
    %v433 = vpack.c.bf16 %v376, %v373
    %v434 = vpack.c.bf16 %v377, %v374
    %v435 = vpack.c.bf16 %v378, %v375
    %v436 = vpack.c.bf16 %v382, %v379
    %v437 = vpack.c.bf16 %v383, %v380
    %v438 = vpack.c.bf16 %v384, %v381
    %v439 = vpack.c.bf16 %v388, %v385
    %v440 = vpack.c.bf16 %v389, %v386
    %v441 = vpack.c.bf16 %v390, %v387
    %v442 = vpack.c.bf16 %v394, %v391
    %v443 = vpack.c.bf16 %v395, %v392
    %v444 = vpack.c.bf16 %v396, %v393
    %v445 = vld [vmem:[#allocation5] sm:$0xff]
    %v446 = vld [vmem:[#allocation5 + $0x8] sm:$0xff]
    %v447 = vld [vmem:[#allocation5 + $0x10] sm:$0xff]
    %v448 = vld [vmem:[#allocation5 + $0x18] sm:$0xff]
    %v449 = vld [vmem:[#allocation5 + $0x20] sm:$0xff]
    %v450 = vld [vmem:[#allocation5 + $0x28] sm:$0xff]
    %v451 = vld [vmem:[#allocation5 + $0x30] sm:$0xff]
    %v452 = vld [vmem:[#allocation5 + $0x38] sm:$0xff]
    %v453 = vld [vmem:[#allocation5 + $0x40] sm:$0xff]
    %v454 = vld [vmem:[#allocation5 + $0x48] sm:$0xff]
    %v455 = vld [vmem:[#allocation5 + $0x50] sm:$0xff]
    %v456 = vld [vmem:[#allocation5 + $0x58] sm:$0xff]
    %v457 = vld [vmem:[#allocation5 + $0x60] sm:$0xff]
    %v458 = vld [vmem:[#allocation5 + $0x68] sm:$0xff]
    %v459 = vld [vmem:[#allocation5 + $0x70] sm:$0xff]
    %v460 = vld [vmem:[#allocation5 + $0x78] sm:$0xff]
    %v461 = vld [vmem:[#allocation5 + $0x80] sm:$0xff]
    %v462 = vld [vmem:[#allocation5 + $0x88] sm:$0xff]
    %v463 = vld [vmem:[#allocation5 + $0x90] sm:$0xff]
    %v464 = vld [vmem:[#allocation5 + $0x98] sm:$0xff]
    %v465 = vld [vmem:[#allocation5 + $0xa0] sm:$0xff]
    %v466 = vld [vmem:[#allocation5 + $0xa8] sm:$0xff]
    %v467 = vld [vmem:[#allocation5 + $0xb0] sm:$0xff]
    %v468 = vld [vmem:[#allocation5 + $0xb8] sm:$0xff]
    %v469 = vld [vmem:[#allocation5 + $0xc0] sm:$0xff]
    %v470 = vld [vmem:[#allocation5 + $0xc8] sm:$0xff]
    %v471 = vld [vmem:[#allocation5 + $0xd0] sm:$0xff]
    %v472 = vld [vmem:[#allocation5 + $0xd8] sm:$0xff]
    %v473 = vld [vmem:[#allocation5 + $0xe0] sm:$0xff]
    %v474 = vld [vmem:[#allocation5 + $0xe8] sm:$0xff]
    %v475 = vld [vmem:[#allocation5 + $0xf0] sm:$0xff]
    %v476 = vld [vmem:[#allocation5 + $0xf8] sm:$0xff]
    %v477 = vld [vmem:[#allocation5 + $0x100] sm:$0xff]
    %v478 = vld [vmem:[#allocation5 + $0x108] sm:$0xff]
    %v479 = vld [vmem:[#allocation5 + $0x110] sm:$0xff]
    %v480 = vld [vmem:[#allocation5 + $0x118] sm:$0xff]
    %v481 = vld [vmem:[#allocation5 + $0x120] sm:$0xff]
    %v482 = vld [vmem:[#allocation5 + $0x128] sm:$0xff]
    %v483 = vld [vmem:[#allocation5 + $0x130] sm:$0xff]
    %v484 = vld [vmem:[#allocation5 + $0x138] sm:$0xff]
    %v485 = vld [vmem:[#allocation5 + $0x140] sm:$0xff]
    %v486 = vld [vmem:[#allocation5 + $0x148] sm:$0xff]
    %v487 = vld [vmem:[#allocation5 + $0x150] sm:$0xff]
    %v488 = vld [vmem:[#allocation5 + $0x158] sm:$0xff]
    %v489 = vld [vmem:[#allocation5 + $0x160] sm:$0xff]
    %v490 = vld [vmem:[#allocation5 + $0x168] sm:$0xff]
    %v491 = vld [vmem:[#allocation5 + $0x170] sm:$0xff]
    %v492 = vld [vmem:[#allocation5 + $0x178] sm:$0xff]
    %v493 = vld [vmem:[#allocation5 + $0x180] sm:$0xff]
    %v494 = vld [vmem:[#allocation5 + $0x188] sm:$0xff]
    %v495 = vld [vmem:[#allocation5 + $0x190] sm:$0xff]
    %v496 = vld [vmem:[#allocation5 + $0x198] sm:$0xff]
    %v497 = vld [vmem:[#allocation5 + $0x1a0] sm:$0xff]
    %v498 = vld [vmem:[#allocation5 + $0x1a8] sm:$0xff]
    %v499 = vld [vmem:[#allocation5 + $0x1b0] sm:$0xff]
    %v500 = vld [vmem:[#allocation5 + $0x1b8] sm:$0xff]
    %v501 = vld [vmem:[#allocation5 + $0x1c0] sm:$0xff]
    %v502 = vld [vmem:[#allocation5 + $0x1c8] sm:$0xff]
    %v503 = vld [vmem:[#allocation5 + $0x1d0] sm:$0xff]
    %v504 = vld [vmem:[#allocation5 + $0x1d8] sm:$0xff]
    %v505 = vld [vmem:[#allocation5 + $0x1e0] sm:$0xff]
    %v506 = vld [vmem:[#allocation5 + $0x1e8] sm:$0xff]
    %v507 = vld [vmem:[#allocation5 + $0x1f0] sm:$0xff]
    %v508 = vld [vmem:[#allocation5 + $0x1f8] sm:$0xff]
    %v509 = vld [vmem:[#allocation5 + $0x200] sm:$0xff]
    %v510 = vld [vmem:[#allocation5 + $0x208] sm:$0xff]
    %v511 = vld [vmem:[#allocation5 + $0x210] sm:$0xff]
    %v512 = vld [vmem:[#allocation5 + $0x218] sm:$0xff]
    %v513 = vld [vmem:[#allocation5 + $0x220] sm:$0xff]
    %v514 = vld [vmem:[#allocation5 + $0x228] sm:$0xff]
    %v515 = vld [vmem:[#allocation5 + $0x230] sm:$0xff]
    %v516 = vld [vmem:[#allocation5 + $0x238] sm:$0xff]
    %v517 = vld [vmem:[#allocation5 + $0x240] sm:$0xff]
    %v518 = vld [vmem:[#allocation5 + $0x248] sm:$0xff]
    %v519 = vld [vmem:[#allocation5 + $0x250] sm:$0xff]
    %v520 = vld [vmem:[#allocation5 + $0x258] sm:$0xff]
    %v521 = vld [vmem:[#allocation5 + $0x260] sm:$0xff]
    %v522 = vld [vmem:[#allocation5 + $0x268] sm:$0xff]
    %v523 = vld [vmem:[#allocation5 + $0x270] sm:$0xff]
    %v524 = vld [vmem:[#allocation5 + $0x278] sm:$0xff]
    %v525 = vld [vmem:[#allocation5 + $0x280] sm:$0xff]
    %v526 = vld [vmem:[#allocation5 + $0x288] sm:$0xff]
    %v527 = vld [vmem:[#allocation5 + $0x290] sm:$0xff]
    %v528 = vld [vmem:[#allocation5 + $0x298] sm:$0xff]
    %v529 = vld [vmem:[#allocation5 + $0x2a0] sm:$0xff]
    %v530 = vld [vmem:[#allocation5 + $0x2a8] sm:$0xff]
    %v531 = vld [vmem:[#allocation5 + $0x2b0] sm:$0xff]
    %v532 = vld [vmem:[#allocation5 + $0x2b8] sm:$0xff]
    %v533 = vld [vmem:[#allocation5 + $0x2c0] sm:$0xff]
    %v534 = vld [vmem:[#allocation5 + $0x2c8] sm:$0xff]
    %v535 = vld [vmem:[#allocation5 + $0x2d0] sm:$0xff]
    %v536 = vld [vmem:[#allocation5 + $0x2d8] sm:$0xff]
    %v537 = vld [vmem:[#allocation5 + $0x2e0] sm:$0xff]
    %v538 = vld [vmem:[#allocation5 + $0x2e8] sm:$0xff]
    %v539 = vld [vmem:[#allocation5 + $0x2f0] sm:$0xff]
    %v540 = vld [vmem:[#allocation5 + $0x2f8] sm:$0xff]
    %v637 = vunpack.c.l.b16 %v445
    %v638 = vunpack.c.h.b16 %v445
    %v639 = vunpack.c.l.b16 %v446
    %v640 = vunpack.c.h.b16 %v446
    %v641 = vunpack.c.l.b16 %v447
    %v642 = vunpack.c.h.b16 %v447
    %v643 = vunpack.c.l.b16 %v448
    %v644 = vunpack.c.h.b16 %v448
    %v645 = vunpack.c.l.b16 %v449
    %v646 = vunpack.c.h.b16 %v449
    %v647 = vunpack.c.l.b16 %v450
    %v648 = vunpack.c.h.b16 %v450
    %v649 = vunpack.c.l.b16 %v451
    %v650 = vunpack.c.h.b16 %v451
    %v651 = vunpack.c.l.b16 %v452
    %v652 = vunpack.c.h.b16 %v452
    %v653 = vunpack.c.l.b16 %v453
    %v654 = vunpack.c.h.b16 %v453
    %v655 = vunpack.c.l.b16 %v454
    %v656 = vunpack.c.h.b16 %v454
    %v657 = vunpack.c.l.b16 %v455
    %v658 = vunpack.c.h.b16 %v455
    %v659 = vunpack.c.l.b16 %v456
    %v660 = vunpack.c.h.b16 %v456
    %v661 = vunpack.c.l.b16 %v457
    %v662 = vunpack.c.h.b16 %v457
    %v663 = vunpack.c.l.b16 %v458
    %v664 = vunpack.c.h.b16 %v458
    %v665 = vunpack.c.l.b16 %v459
    %v666 = vunpack.c.h.b16 %v459
    %v667 = vunpack.c.l.b16 %v460
    %v668 = vunpack.c.h.b16 %v460
    %v669 = vunpack.c.l.b16 %v461
    %v670 = vunpack.c.h.b16 %v461
    %v671 = vunpack.c.l.b16 %v462
    %v672 = vunpack.c.h.b16 %v462
    %v673 = vunpack.c.l.b16 %v463
    %v674 = vunpack.c.h.b16 %v463
    %v675 = vunpack.c.l.b16 %v464
    %v676 = vunpack.c.h.b16 %v464
    %v677 = vunpack.c.l.b16 %v465
    %v678 = vunpack.c.h.b16 %v465
    %v679 = vunpack.c.l.b16 %v466
    %v680 = vunpack.c.h.b16 %v466
    %v681 = vunpack.c.l.b16 %v467
    %v682 = vunpack.c.h.b16 %v467
    %v683 = vunpack.c.l.b16 %v468
    %v684 = vunpack.c.h.b16 %v468
    %v685 = vunpack.c.l.b16 %v469
    %v686 = vunpack.c.h.b16 %v469
    %v687 = vunpack.c.l.b16 %v470
    %v688 = vunpack.c.h.b16 %v470
    %v689 = vunpack.c.l.b16 %v471
    %v690 = vunpack.c.h.b16 %v471
    %v691 = vunpack.c.l.b16 %v472
    %v692 = vunpack.c.h.b16 %v472
    %v693 = vunpack.c.l.b16 %v473
    %v694 = vunpack.c.h.b16 %v473
    %v695 = vunpack.c.l.b16 %v474
    %v696 = vunpack.c.h.b16 %v474
    %v697 = vunpack.c.l.b16 %v475
    %v698 = vunpack.c.h.b16 %v475
    %v699 = vunpack.c.l.b16 %v476
    %v700 = vunpack.c.h.b16 %v476
    %v701 = vunpack.c.l.b16 %v477
    %v702 = vunpack.c.h.b16 %v477
    %v703 = vunpack.c.l.b16 %v478
    %v704 = vunpack.c.h.b16 %v478
    %v705 = vunpack.c.l.b16 %v479
    %v706 = vunpack.c.h.b16 %v479
    %v707 = vunpack.c.l.b16 %v480
    %v708 = vunpack.c.h.b16 %v480
    %v709 = vunpack.c.l.b16 %v481
    %v710 = vunpack.c.h.b16 %v481
    %v711 = vunpack.c.l.b16 %v482
    %v712 = vunpack.c.h.b16 %v482
    %v713 = vunpack.c.l.b16 %v483
    %v714 = vunpack.c.h.b16 %v483
    %v715 = vunpack.c.l.b16 %v484
    %v716 = vunpack.c.h.b16 %v484
    %v717 = vunpack.c.l.b16 %v485
    %v718 = vunpack.c.h.b16 %v485
    %v719 = vunpack.c.l.b16 %v486
    %v720 = vunpack.c.h.b16 %v486
    %v721 = vunpack.c.l.b16 %v487
    %v722 = vunpack.c.h.b16 %v487
    %v723 = vunpack.c.l.b16 %v488
    %v724 = vunpack.c.h.b16 %v488
    %v725 = vunpack.c.l.b16 %v489
    %v726 = vunpack.c.h.b16 %v489
    %v727 = vunpack.c.l.b16 %v490
    %v728 = vunpack.c.h.b16 %v490
    %v729 = vunpack.c.l.b16 %v491
    %v730 = vunpack.c.h.b16 %v491
    %v731 = vunpack.c.l.b16 %v492
    %v732 = vunpack.c.h.b16 %v492
    %v733 = vunpack.c.l.b16 %v493
    %v734 = vunpack.c.h.b16 %v493
    %v735 = vunpack.c.l.b16 %v494
    %v736 = vunpack.c.h.b16 %v494
    %v737 = vunpack.c.l.b16 %v495
    %v738 = vunpack.c.h.b16 %v495
    %v739 = vunpack.c.l.b16 %v496
    %v740 = vunpack.c.h.b16 %v496
    %v741 = vunpack.c.l.b16 %v497
    %v742 = vunpack.c.h.b16 %v497
    %v743 = vunpack.c.l.b16 %v498
    %v744 = vunpack.c.h.b16 %v498
    %v745 = vunpack.c.l.b16 %v499
    %v746 = vunpack.c.h.b16 %v499
    %v747 = vunpack.c.l.b16 %v500
    %v748 = vunpack.c.h.b16 %v500
    %v749 = vunpack.c.l.b16 %v501
    %v750 = vunpack.c.h.b16 %v501
    %v751 = vunpack.c.l.b16 %v502
    %v752 = vunpack.c.h.b16 %v502
    %v753 = vunpack.c.l.b16 %v503
    %v754 = vunpack.c.h.b16 %v503
    %v755 = vunpack.c.l.b16 %v504
    %v756 = vunpack.c.h.b16 %v504
    %v757 = vunpack.c.l.b16 %v505
    %v758 = vunpack.c.h.b16 %v505
    %v759 = vunpack.c.l.b16 %v506
    %v760 = vunpack.c.h.b16 %v506
    %v761 = vunpack.c.l.b16 %v507
    %v762 = vunpack.c.h.b16 %v507
    %v763 = vunpack.c.l.b16 %v508
    %v764 = vunpack.c.h.b16 %v508
    %v765 = vunpack.c.l.b16 %v509
    %v766 = vunpack.c.h.b16 %v509
    %v767 = vunpack.c.l.b16 %v510
    %v768 = vunpack.c.h.b16 %v510
    %v769 = vunpack.c.l.b16 %v511
    %v770 = vunpack.c.h.b16 %v511
    %v771 = vunpack.c.l.b16 %v512
    %v772 = vunpack.c.h.b16 %v512
    %v773 = vunpack.c.l.b16 %v513
    %v774 = vunpack.c.h.b16 %v513
    %v775 = vunpack.c.l.b16 %v514
    %v776 = vunpack.c.h.b16 %v514
    %v777 = vunpack.c.l.b16 %v515
    %v778 = vunpack.c.h.b16 %v515
    %v779 = vunpack.c.l.b16 %v516
    %v780 = vunpack.c.h.b16 %v516
    %v781 = vunpack.c.l.b16 %v517
    %v782 = vunpack.c.h.b16 %v517
    %v783 = vunpack.c.l.b16 %v518
    %v784 = vunpack.c.h.b16 %v518
    %v785 = vunpack.c.l.b16 %v519
    %v786 = vunpack.c.h.b16 %v519
    %v787 = vunpack.c.l.b16 %v520
    %v788 = vunpack.c.h.b16 %v520
    %v789 = vunpack.c.l.b16 %v521
    %v790 = vunpack.c.h.b16 %v521
    %v791 = vunpack.c.l.b16 %v522
    %v792 = vunpack.c.h.b16 %v522
    %v793 = vunpack.c.l.b16 %v523
    %v794 = vunpack.c.h.b16 %v523
    %v795 = vunpack.c.l.b16 %v524
    %v796 = vunpack.c.h.b16 %v524
    %v797 = vunpack.c.l.b16 %v525
    %v798 = vunpack.c.h.b16 %v525
    %v799 = vunpack.c.l.b16 %v526
    %v800 = vunpack.c.h.b16 %v526
    %v801 = vunpack.c.l.b16 %v527
    %v802 = vunpack.c.h.b16 %v527
    %v803 = vunpack.c.l.b16 %v528
    %v804 = vunpack.c.h.b16 %v528
    %v805 = vunpack.c.l.b16 %v529
    %v806 = vunpack.c.h.b16 %v529
    %v807 = vunpack.c.l.b16 %v530
    %v808 = vunpack.c.h.b16 %v530
    %v809 = vunpack.c.l.b16 %v531
    %v810 = vunpack.c.h.b16 %v531
    %v811 = vunpack.c.l.b16 %v532
    %v812 = vunpack.c.h.b16 %v532
    %v813 = vunpack.c.l.b16 %v533
    %v814 = vunpack.c.h.b16 %v533
    %v815 = vunpack.c.l.b16 %v534
    %v816 = vunpack.c.h.b16 %v534
    %v817 = vunpack.c.l.b16 %v535
    %v818 = vunpack.c.h.b16 %v535
    %v819 = vunpack.c.l.b16 %v536
    %v820 = vunpack.c.h.b16 %v536
    %v821 = vunpack.c.l.b16 %v537
    %v822 = vunpack.c.h.b16 %v537
    %v823 = vunpack.c.l.b16 %v538
    %v824 = vunpack.c.h.b16 %v538
    %v825 = vunpack.c.l.b16 %v539
    %v826 = vunpack.c.h.b16 %v539
    %v827 = vunpack.c.l.b16 %v540
    %v828 = vunpack.c.h.b16 %v540
    %v829 = vpack.c.b16 %v641, %v637
    %v830 = vpack.c.b16 %v642, %v638
    %v831 = vpack.c.b16 %v643, %v639
    %v832 = vpack.c.b16 %v644, %v640
    %v833 = vpack.c.b16 %v649, %v645
    %v834 = vpack.c.b16 %v650, %v646
    %v835 = vpack.c.b16 %v651, %v647
    %v836 = vpack.c.b16 %v652, %v648
    %v837 = vpack.c.b16 %v657, %v653
    %v838 = vpack.c.b16 %v658, %v654
    %v839 = vpack.c.b16 %v659, %v655
    %v840 = vpack.c.b16 %v660, %v656
    %v841 = vpack.c.b16 %v665, %v661
    %v842 = vpack.c.b16 %v666, %v662
    %v843 = vpack.c.b16 %v667, %v663
    %v844 = vpack.c.b16 %v668, %v664
    %v845 = vpack.c.b16 %v673, %v669
    %v846 = vpack.c.b16 %v674, %v670
    %v847 = vpack.c.b16 %v675, %v671
    %v848 = vpack.c.b16 %v676, %v672
    %v849 = vpack.c.b16 %v681, %v677
    %v850 = vpack.c.b16 %v682, %v678
    %v851 = vpack.c.b16 %v683, %v679
    %v852 = vpack.c.b16 %v684, %v680
    %v853 = vpack.c.b16 %v689, %v685
    %v854 = vpack.c.b16 %v690, %v686
    %v855 = vpack.c.b16 %v691, %v687
    %v856 = vpack.c.b16 %v692, %v688
    %v857 = vpack.c.b16 %v697, %v693
    %v858 = vpack.c.b16 %v698, %v694
    %v859 = vpack.c.b16 %v699, %v695
    %v860 = vpack.c.b16 %v700, %v696
    %v861 = vpack.c.b16 %v705, %v701
    %v862 = vpack.c.b16 %v706, %v702
    %v863 = vpack.c.b16 %v707, %v703
    %v864 = vpack.c.b16 %v708, %v704
    %v865 = vpack.c.b16 %v713, %v709
    %v866 = vpack.c.b16 %v714, %v710
    %v867 = vpack.c.b16 %v715, %v711
    %v868 = vpack.c.b16 %v716, %v712
    %v869 = vpack.c.b16 %v721, %v717
    %v870 = vpack.c.b16 %v722, %v718
    %v871 = vpack.c.b16 %v723, %v719
    %v872 = vpack.c.b16 %v724, %v720
    %v873 = vpack.c.b16 %v729, %v725
    %v874 = vpack.c.b16 %v730, %v726
    %v875 = vpack.c.b16 %v731, %v727
    %v876 = vpack.c.b16 %v732, %v728
    %v877 = vpack.c.b16 %v737, %v733
    %v878 = vpack.c.b16 %v738, %v734
    %v879 = vpack.c.b16 %v739, %v735
    %v880 = vpack.c.b16 %v740, %v736
    %v881 = vpack.c.b16 %v745, %v741
    %v882 = vpack.c.b16 %v746, %v742
    %v883 = vpack.c.b16 %v747, %v743
    %v884 = vpack.c.b16 %v748, %v744
    %v885 = vpack.c.b16 %v753, %v749
    %v886 = vpack.c.b16 %v754, %v750
    %v887 = vpack.c.b16 %v755, %v751
    %v888 = vpack.c.b16 %v756, %v752
    %v889 = vpack.c.b16 %v761, %v757
    %v890 = vpack.c.b16 %v762, %v758
    %v891 = vpack.c.b16 %v763, %v759
    %v892 = vpack.c.b16 %v764, %v760
    %v893 = vpack.c.b16 %v769, %v765
    %v894 = vpack.c.b16 %v770, %v766
    %v895 = vpack.c.b16 %v771, %v767
    %v896 = vpack.c.b16 %v772, %v768
    %v897 = vpack.c.b16 %v777, %v773
    %v898 = vpack.c.b16 %v778, %v774
    %v899 = vpack.c.b16 %v779, %v775
    %v900 = vpack.c.b16 %v780, %v776
    %v901 = vpack.c.b16 %v785, %v781
    %v902 = vpack.c.b16 %v786, %v782
    %v903 = vpack.c.b16 %v787, %v783
    %v904 = vpack.c.b16 %v788, %v784
    %v905 = vpack.c.b16 %v793, %v789
    %v906 = vpack.c.b16 %v794, %v790
    %v907 = vpack.c.b16 %v795, %v791
    %v908 = vpack.c.b16 %v796, %v792
    %v909 = vpack.c.b16 %v801, %v797
    %v910 = vpack.c.b16 %v802, %v798
    %v911 = vpack.c.b16 %v803, %v799
    %v912 = vpack.c.b16 %v804, %v800
    %v913 = vpack.c.b16 %v809, %v805
    %v914 = vpack.c.b16 %v810, %v806
    %v915 = vpack.c.b16 %v811, %v807
    %v916 = vpack.c.b16 %v812, %v808
    %v917 = vpack.c.b16 %v817, %v813
    %v918 = vpack.c.b16 %v818, %v814
    %v919 = vpack.c.b16 %v819, %v815
    %v920 = vpack.c.b16 %v820, %v816
    %v921 = vpack.c.b16 %v825, %v821
    %v922 = vpack.c.b16 %v826, %v822
    %v923 = vpack.c.b16 %v827, %v823
    %v924 = vpack.c.b16 %v828, %v824
    %1021 = vmatprep.subr.bf16.mxu0 %v858
    %1022 = vmatpush1.bf16.msra.mxu0 %v857
    %1023 = vmatprep.subr.bf16.mxu0 %v854
    %1024 = vmatpush1.bf16.msra.mxu0 %v853
    %1025 = vmatprep.subr.bf16.mxu0 %v850
    %1026 = vmatpush1.bf16.msra.mxu0 %v849
    %1027 = vmatprep.subr.bf16.mxu0 %v846
    %1028 = vmatpush1.bf16.msra.mxu0 %v845
    %1029 = vmatprep.subr.bf16.mxu0 %v842
    %1030 = vmatpush1.bf16.msra.mxu0 %v841
    %1031 = vmatprep.subr.bf16.mxu0 %v838
    %1032 = vmatpush1.bf16.msra.mxu0 %v837
    %1033 = vmatprep.subr.bf16.mxu0 %v834
    %1034 = vmatpush1.bf16.msra.mxu0 %v833
    %1035 = vmatprep.subr.bf16.mxu0 %v830
    %1036 = vmatpush1.bf16.msra.mxu0 %v829
    %1037 = vmatprep.subr.bf16.mxu0 %v890
    %1038 = vmatpush2.bf16.msra.mxu0 %v889
    %1039 = vmatprep.subr.bf16.mxu0 %v886
    %1040 = vmatpush2.bf16.msra.mxu0 %v885
    %1041 = vmatprep.subr.bf16.mxu0 %v882
    %1042 = vmatpush2.bf16.msra.mxu0 %v881
    %1043 = vmatprep.subr.bf16.mxu0 %v878
    %1044 = vmatpush2.bf16.msra.mxu0 %v877
    %1045 = vmatprep.subr.bf16.mxu0 %v874
    %1046 = vmatpush2.bf16.msra.mxu0 %v873
    %1047 = vmatprep.subr.bf16.mxu0 %v870
    %1048 = vmatpush2.bf16.msra.mxu0 %v869
    %1049 = vmatprep.subr.bf16.mxu0 %v866
    %1050 = vmatpush2.bf16.msra.mxu0 %v865
    %1051 = vmatprep.subr.bf16.mxu0 %v862
    %1052 = vmatpush2.bf16.msra.mxu0 %v861
    %1053 = vmatprep.mubr.bf16.mxu0 %v398
    %1054 = vmatmul.mubr.bf16.gmra.mxu0 %v397
    %v1055 = vpop.f32.mrf.mxu0
    %v1056 = vadd.f32 0.0, %v1055
    %v1057 = vpop.f32.mrf.mxu0
    %v1058 = vadd.f32 0.0, %v1057
    %v1059 = vpop.f32.mrf.mxu0
    %v1060 = vadd.f32 0.0, %v1059
    %v1061 = vpop.f32.mrf.mxu0
    %v1062 = vadd.f32 0.0, %v1061
    %1063 = vmatprep.mubr.bf16.mxu0 %v401
    %1064 = vmatmul.mubr.bf16.gmra.mxu0 %v400
    %v1065 = vpop.f32.mrf.mxu0
    %v1066 = vadd.f32 0.0, %v1065
    %v1067 = vpop.f32.mrf.mxu0
    %v1068 = vadd.f32 0.0, %v1067
    %v1069 = vpop.f32.mrf.mxu0
    %v1070 = vadd.f32 0.0, %v1069
    %v1071 = vpop.f32.mrf.mxu0
    %v1072 = vadd.f32 0.0, %v1071
    %1073 = vmatprep.mubr.bf16.mxu0 %v404
    %1074 = vmatmul.mubr.bf16.gmra.mxu0 %v403
    %v1075 = vpop.f32.mrf.mxu0
    %v1076 = vadd.f32 0.0, %v1075
    %v1077 = vpop.f32.mrf.mxu0
    %v1078 = vadd.f32 0.0, %v1077
    %v1079 = vpop.f32.mrf.mxu0
    %v1080 = vadd.f32 0.0, %v1079
    %v1081 = vpop.f32.mrf.mxu0
    %v1082 = vadd.f32 0.0, %v1081
    %1083 = vmatprep.mubr.bf16.mxu0 %v407
    %1084 = vmatmul.mubr.bf16.gmra.mxu0 %v406
    %v1085 = vpop.f32.mrf.mxu0
    %v1086 = vadd.f32 0.0, %v1085
    %v1087 = vpop.f32.mrf.mxu0
    %v1088 = vadd.f32 0.0, %v1087
    %v1089 = vpop.f32.mrf.mxu0
    %v1090 = vadd.f32 0.0, %v1089
    %v1091 = vpop.f32.mrf.mxu0
    %v1092 = vadd.f32 0.0, %v1091
    %1093 = vmatprep.mubr.bf16.mxu0 %v410
    %1094 = vmatmul.mubr.bf16.gmra.mxu0 %v409
    %v1095 = vpop.f32.mrf.mxu0
    %v1096 = vadd.f32 0.0, %v1095
    %v1097 = vpop.f32.mrf.mxu0
    %v1098 = vadd.f32 0.0, %v1097
    %v1099 = vpop.f32.mrf.mxu0
    %v1100 = vadd.f32 0.0, %v1099
    %v1101 = vpop.f32.mrf.mxu0
    %v1102 = vadd.f32 0.0, %v1101
    %1103 = vmatprep.mubr.bf16.mxu0 %v413
    %1104 = vmatmul.mubr.bf16.gmra.mxu0 %v412
    %v1105 = vpop.f32.mrf.mxu0
    %v1106 = vadd.f32 0.0, %v1105
    %v1107 = vpop.f32.mrf.mxu0
    %v1108 = vadd.f32 0.0, %v1107
    %v1109 = vpop.f32.mrf.mxu0
    %v1110 = vadd.f32 0.0, %v1109
    %v1111 = vpop.f32.mrf.mxu0
    %v1112 = vadd.f32 0.0, %v1111
    %1113 = vmatprep.mubr.bf16.mxu0 %v416
    %1114 = vmatmul.mubr.bf16.gmra.mxu0 %v415
    %v1115 = vpop.f32.mrf.mxu0
    %v1116 = vadd.f32 0.0, %v1115
    %v1117 = vpop.f32.mrf.mxu0
    %v1118 = vadd.f32 0.0, %v1117
    %v1119 = vpop.f32.mrf.mxu0
    %v1120 = vadd.f32 0.0, %v1119
    %v1121 = vpop.f32.mrf.mxu0
    %v1122 = vadd.f32 0.0, %v1121
    %1123 = vmatprep.mubr.bf16.mxu0 %v419
    %1124 = vmatmul.mubr.bf16.gmra.mxu0 %v418
    %v1125 = vpop.f32.mrf.mxu0
    %v1126 = vadd.f32 0.0, %v1125
    %v1127 = vpop.f32.mrf.mxu0
    %v1128 = vadd.f32 0.0, %v1127
    %v1129 = vpop.f32.mrf.mxu0
    %v1130 = vadd.f32 0.0, %v1129
    %v1131 = vpop.f32.mrf.mxu0
    %v1132 = vadd.f32 0.0, %v1131
    %1133 = vmatprep.mubr.bf16.mxu0 %v422
    %1134 = vmatmul.mubr.bf16.gmra.mxu0 %v421
    %v1135 = vpop.f32.mrf.mxu0
    %v1136 = vadd.f32 0.0, %v1135
    %v1137 = vpop.f32.mrf.mxu0
    %v1138 = vadd.f32 0.0, %v1137
    %v1139 = vpop.f32.mrf.mxu0
    %v1140 = vadd.f32 0.0, %v1139
    %v1141 = vpop.f32.mrf.mxu0
    %v1142 = vadd.f32 0.0, %v1141
    %1143 = vmatprep.mubr.bf16.mxu0 %v425
    %1144 = vmatmul.mubr.bf16.gmra.mxu0 %v424
    %v1145 = vpop.f32.mrf.mxu0
    %v1146 = vadd.f32 0.0, %v1145
    %v1147 = vpop.f32.mrf.mxu0
    %v1148 = vadd.f32 0.0, %v1147
    %v1149 = vpop.f32.mrf.mxu0
    %v1150 = vadd.f32 0.0, %v1149
    %v1151 = vpop.f32.mrf.mxu0
    %v1152 = vadd.f32 0.0, %v1151
    %1153 = vmatprep.mubr.bf16.mxu0 %v428
    %1154 = vmatmul.mubr.bf16.gmra.mxu0 %v427
    %v1155 = vpop.f32.mrf.mxu0
    %v1156 = vadd.f32 0.0, %v1155
    %v1157 = vpop.f32.mrf.mxu0
    %v1158 = vadd.f32 0.0, %v1157
    %v1159 = vpop.f32.mrf.mxu0
    %v1160 = vadd.f32 0.0, %v1159
    %v1161 = vpop.f32.mrf.mxu0
    %v1162 = vadd.f32 0.0, %v1161
    %1163 = vmatprep.mubr.bf16.mxu0 %v431
    %1164 = vmatmul.mubr.bf16.gmra.mxu0 %v430
    %v1165 = vpop.f32.mrf.mxu0
    %v1166 = vadd.f32 0.0, %v1165
    %v1167 = vpop.f32.mrf.mxu0
    %v1168 = vadd.f32 0.0, %v1167
    %v1169 = vpop.f32.mrf.mxu0
    %v1170 = vadd.f32 0.0, %v1169
    %v1171 = vpop.f32.mrf.mxu0
    %v1172 = vadd.f32 0.0, %v1171
    %1173 = vmatprep.mubr.bf16.mxu0 %v434
    %1174 = vmatmul.mubr.bf16.gmra.mxu0 %v433
    %v1175 = vpop.f32.mrf.mxu0
    %v1176 = vadd.f32 0.0, %v1175
    %v1177 = vpop.f32.mrf.mxu0
    %v1178 = vadd.f32 0.0, %v1177
    %v1179 = vpop.f32.mrf.mxu0
    %v1180 = vadd.f32 0.0, %v1179
    %v1181 = vpop.f32.mrf.mxu0
    %v1182 = vadd.f32 0.0, %v1181
    %1183 = vmatprep.mubr.bf16.mxu0 %v437
    %1184 = vmatmul.mubr.bf16.gmra.mxu0 %v436
    %v1185 = vpop.f32.mrf.mxu0
    %v1186 = vadd.f32 0.0, %v1185
    %v1187 = vpop.f32.mrf.mxu0
    %v1188 = vadd.f32 0.0, %v1187
    %v1189 = vpop.f32.mrf.mxu0
    %v1190 = vadd.f32 0.0, %v1189
    %v1191 = vpop.f32.mrf.mxu0
    %v1192 = vadd.f32 0.0, %v1191
    %1193 = vmatprep.mubr.bf16.mxu0 %v440
    %1194 = vmatmul.mubr.bf16.gmra.mxu0 %v439
    %v1195 = vpop.f32.mrf.mxu0
    %v1196 = vadd.f32 0.0, %v1195
    %v1197 = vpop.f32.mrf.mxu0
    %v1198 = vadd.f32 0.0, %v1197
    %v1199 = vpop.f32.mrf.mxu0
    %v1200 = vadd.f32 0.0, %v1199
    %v1201 = vpop.f32.mrf.mxu0
    %v1202 = vadd.f32 0.0, %v1201
    %1203 = vmatprep.mubr.bf16.mxu0 %v443
    %1204 = vmatmul.mubr.bf16.gmra.mxu0 %v442
    %v1205 = vpop.f32.mrf.mxu0
    %v1206 = vadd.f32 0.0, %v1205
    %v1207 = vpop.f32.mrf.mxu0
    %v1208 = vadd.f32 0.0, %v1207
    %v1209 = vpop.f32.mrf.mxu0
    %v1210 = vadd.f32 0.0, %v1209
    %v1211 = vpop.f32.mrf.mxu0
    %v1212 = vadd.f32 0.0, %v1211
    %1213 = vdwg.mxu0
    %1214 = vmatprep.subr.bf16.mxu0 %v922
    %1215 = vmatpush1.bf16.msra.mxu0 %v921
    %1216 = vmatprep.subr.bf16.mxu0 %v918
    %1217 = vmatpush1.bf16.msra.mxu0 %v917
    %1218 = vmatprep.subr.bf16.mxu0 %v914
    %1219 = vmatpush1.bf16.msra.mxu0 %v913
    %1220 = vmatprep.subr.bf16.mxu0 %v910
    %1221 = vmatpush1.bf16.msra.mxu0 %v909
    %1222 = vmatprep.subr.bf16.mxu0 %v906
    %1223 = vmatpush1.bf16.msra.mxu0 %v905
    %1224 = vmatprep.subr.bf16.mxu0 %v902
    %1225 = vmatpush1.bf16.msra.mxu0 %v901
    %1226 = vmatprep.subr.bf16.mxu0 %v898
    %1227 = vmatpush1.bf16.msra.mxu0 %v897
    %1228 = vmatprep.subr.bf16.mxu0 %v894
    %1229 = vmatpush1.bf16.msra.mxu0 %v893
    %1230 = vmatprep.subr.bf16.mxu0 0
    %1231 = vmatpush2.bf16.msra.mxu0 0
    %1232 = vmatprep.subr.bf16.mxu0 0
    %1233 = vmatpush2.bf16.msra.mxu0 0
    %1234 = vmatprep.subr.bf16.mxu0 0
    %1235 = vmatpush2.bf16.msra.mxu0 0
    %1236 = vmatprep.subr.bf16.mxu0 0
    %1237 = vmatpush2.bf16.msra.mxu0 0
    %1238 = vmatprep.subr.bf16.mxu0 0
    %1239 = vmatpush2.bf16.msra.mxu0 0
    %1240 = vmatprep.subr.bf16.mxu0 0
    %1241 = vmatpush2.bf16.msra.mxu0 0
    %1242 = vmatprep.subr.bf16.mxu0 0
    %1243 = vmatpush2.bf16.msra.mxu0 0
    %1244 = vmatprep.subr.bf16.mxu0 0
    %1245 = vmatpush2.bf16.msra.mxu0 0
    %1246 = vmatprep.mubr.bf16.mxu0 0
    %1247 = vmatmul.mubr.bf16.gmra.mxu0 %v399
    %v1248 = vpop.f32.mrf.mxu0
    %v1249 = vadd.f32 %v1056, %v1248
    %v1250 = vpop.f32.mrf.mxu0
    %v1251 = vadd.f32 %v1058, %v1250
    %v1252 = vpop.f32.mrf.mxu0
    %v1253 = vadd.f32 %v1060, %v1252
    %v1254 = vpop.f32.mrf.mxu0
    %v1255 = vadd.f32 %v1062, %v1254
    %1256 = vmatprep.mubr.bf16.mxu0 0
    %1257 = vmatmul.mubr.bf16.gmra.mxu0 %v402
    %v1258 = vpop.f32.mrf.mxu0
    %v1259 = vadd.f32 %v1066, %v1258
    %v1260 = vpop.f32.mrf.mxu0
    %v1261 = vadd.f32 %v1068, %v1260
    %v1262 = vpop.f32.mrf.mxu0
    %v1263 = vadd.f32 %v1070, %v1262
    %v1264 = vpop.f32.mrf.mxu0
    %v1265 = vadd.f32 %v1072, %v1264
    %1266 = vmatprep.mubr.bf16.mxu0 0
    %1267 = vmatmul.mubr.bf16.gmra.mxu0 %v405
    %v1268 = vpop.f32.mrf.mxu0
    %v1269 = vadd.f32 %v1076, %v1268
    %v1270 = vpop.f32.mrf.mxu0
    %v1271 = vadd.f32 %v1078, %v1270
    %v1272 = vpop.f32.mrf.mxu0
    %v1273 = vadd.f32 %v1080, %v1272
    %v1274 = vpop.f32.mrf.mxu0
    %v1275 = vadd.f32 %v1082, %v1274
    %1276 = vmatprep.mubr.bf16.mxu0 0
    %1277 = vmatmul.mubr.bf16.gmra.mxu0 %v408
    %v1278 = vpop.f32.mrf.mxu0
    %v1279 = vadd.f32 %v1086, %v1278
    %v1280 = vpop.f32.mrf.mxu0
    %v1281 = vadd.f32 %v1088, %v1280
    %v1282 = vpop.f32.mrf.mxu0
    %v1283 = vadd.f32 %v1090, %v1282
    %v1284 = vpop.f32.mrf.mxu0
    %v1285 = vadd.f32 %v1092, %v1284
    %1286 = vmatprep.mubr.bf16.mxu0 0
    %1287 = vmatmul.mubr.bf16.gmra.mxu0 %v411
    %v1288 = vpop.f32.mrf.mxu0
    %v1289 = vadd.f32 %v1096, %v1288
    %v1290 = vpop.f32.mrf.mxu0
    %v1291 = vadd.f32 %v1098, %v1290
    %v1292 = vpop.f32.mrf.mxu0
    %v1293 = vadd.f32 %v1100, %v1292
    %v1294 = vpop.f32.mrf.mxu0
    %v1295 = vadd.f32 %v1102, %v1294
    %1296 = vmatprep.mubr.bf16.mxu0 0
    %1297 = vmatmul.mubr.bf16.gmra.mxu0 %v414
    %v1298 = vpop.f32.mrf.mxu0
    %v1299 = vadd.f32 %v1106, %v1298
    %v1300 = vpop.f32.mrf.mxu0
    %v1301 = vadd.f32 %v1108, %v1300
    %v1302 = vpop.f32.mrf.mxu0
    %v1303 = vadd.f32 %v1110, %v1302
    %v1304 = vpop.f32.mrf.mxu0
    %v1305 = vadd.f32 %v1112, %v1304
    %1306 = vmatprep.mubr.bf16.mxu0 0
    %1307 = vmatmul.mubr.bf16.gmra.mxu0 %v417
    %v1308 = vpop.f32.mrf.mxu0
    %v1309 = vadd.f32 %v1116, %v1308
    %v1310 = vpop.f32.mrf.mxu0
    %v1311 = vadd.f32 %v1118, %v1310
    %v1312 = vpop.f32.mrf.mxu0
    %v1313 = vadd.f32 %v1120, %v1312
    %v1314 = vpop.f32.mrf.mxu0
    %v1315 = vadd.f32 %v1122, %v1314
    %1316 = vmatprep.mubr.bf16.mxu0 0
    %1317 = vmatmul.mubr.bf16.gmra.mxu0 %v420
    %v1318 = vpop.f32.mrf.mxu0
    %v1319 = vadd.f32 %v1126, %v1318
    %v1320 = vpop.f32.mrf.mxu0
    %v1321 = vadd.f32 %v1128, %v1320
    %v1322 = vpop.f32.mrf.mxu0
    %v1323 = vadd.f32 %v1130, %v1322
    %v1324 = vpop.f32.mrf.mxu0
    %v1325 = vadd.f32 %v1132, %v1324
    %1326 = vmatprep.mubr.bf16.mxu0 0
    %1327 = vmatmul.mubr.bf16.gmra.mxu0 %v423
    %v1328 = vpop.f32.mrf.mxu0
    %v1329 = vadd.f32 %v1136, %v1328
    %v1330 = vpop.f32.mrf.mxu0
    %v1331 = vadd.f32 %v1138, %v1330
    %v1332 = vpop.f32.mrf.mxu0
    %v1333 = vadd.f32 %v1140, %v1332
    %v1334 = vpop.f32.mrf.mxu0
    %v1335 = vadd.f32 %v1142, %v1334
    %1336 = vmatprep.mubr.bf16.mxu0 0
    %1337 = vmatmul.mubr.bf16.gmra.mxu0 %v426
    %v1338 = vpop.f32.mrf.mxu0
    %v1339 = vadd.f32 %v1146, %v1338
    %v1340 = vpop.f32.mrf.mxu0
    %v1341 = vadd.f32 %v1148, %v1340
    %v1342 = vpop.f32.mrf.mxu0
    %v1343 = vadd.f32 %v1150, %v1342
    %v1344 = vpop.f32.mrf.mxu0
    %v1345 = vadd.f32 %v1152, %v1344
    %1346 = vmatprep.mubr.bf16.mxu0 0
    %1347 = vmatmul.mubr.bf16.gmra.mxu0 %v429
    %v1348 = vpop.f32.mrf.mxu0
    %v1349 = vadd.f32 %v1156, %v1348
    %v1350 = vpop.f32.mrf.mxu0
    %v1351 = vadd.f32 %v1158, %v1350
    %v1352 = vpop.f32.mrf.mxu0
    %v1353 = vadd.f32 %v1160, %v1352
    %v1354 = vpop.f32.mrf.mxu0
    %v1355 = vadd.f32 %v1162, %v1354
    %1356 = vmatprep.mubr.bf16.mxu0 0
    %1357 = vmatmul.mubr.bf16.gmra.mxu0 %v432
    %v1358 = vpop.f32.mrf.mxu0
    %v1359 = vadd.f32 %v1166, %v1358
    %v1360 = vpop.f32.mrf.mxu0
    %v1361 = vadd.f32 %v1168, %v1360
    %v1362 = vpop.f32.mrf.mxu0
    %v1363 = vadd.f32 %v1170, %v1362
    %v1364 = vpop.f32.mrf.mxu0
    %v1365 = vadd.f32 %v1172, %v1364
    %1366 = vmatprep.mubr.bf16.mxu0 0
    %1367 = vmatmul.mubr.bf16.gmra.mxu0 %v435
    %v1368 = vpop.f32.mrf.mxu0
    %v1369 = vadd.f32 %v1176, %v1368
    %v1370 = vpop.f32.mrf.mxu0
    %v1371 = vadd.f32 %v1178, %v1370
    %v1372 = vpop.f32.mrf.mxu0
    %v1373 = vadd.f32 %v1180, %v1372
    %v1374 = vpop.f32.mrf.mxu0
    %v1375 = vadd.f32 %v1182, %v1374
    %1376 = vmatprep.mubr.bf16.mxu0 0
    %1377 = vmatmul.mubr.bf16.gmra.mxu0 %v438
    %v1378 = vpop.f32.mrf.mxu0
    %v1379 = vadd.f32 %v1186, %v1378
    %v1380 = vpop.f32.mrf.mxu0
    %v1381 = vadd.f32 %v1188, %v1380
    %v1382 = vpop.f32.mrf.mxu0
    %v1383 = vadd.f32 %v1190, %v1382
    %v1384 = vpop.f32.mrf.mxu0
    %v1385 = vadd.f32 %v1192, %v1384
    %1386 = vmatprep.mubr.bf16.mxu0 0
    %1387 = vmatmul.mubr.bf16.gmra.mxu0 %v441
    %v1388 = vpop.f32.mrf.mxu0
    %v1389 = vadd.f32 %v1196, %v1388
    %v1390 = vpop.f32.mrf.mxu0
    %v1391 = vadd.f32 %v1198, %v1390
    %v1392 = vpop.f32.mrf.mxu0
    %v1393 = vadd.f32 %v1200, %v1392
    %v1394 = vpop.f32.mrf.mxu0
    %v1395 = vadd.f32 %v1202, %v1394
    %1396 = vmatprep.mubr.bf16.mxu0 0
    %1397 = vmatmul.mubr.bf16.gmra.mxu0 %v444
    %v1398 = vpop.f32.mrf.mxu0
    %v1399 = vadd.f32 %v1206, %v1398
    %v1400 = vpop.f32.mrf.mxu0
    %v1401 = vadd.f32 %v1208, %v1400
    %v1402 = vpop.f32.mrf.mxu0
    %v1403 = vadd.f32 %v1210, %v1402
    %v1404 = vpop.f32.mrf.mxu0
    %v1405 = vadd.f32 %v1212, %v1404
    %1406 = vdwg.mxu0
    %1407 = vmatprep.subr.bf16.mxu0 %v860
    %1408 = vmatpush1.bf16.msra.mxu0 %v859
    %1409 = vmatprep.subr.bf16.mxu0 %v856
    %1410 = vmatpush1.bf16.msra.mxu0 %v855
    %1411 = vmatprep.subr.bf16.mxu0 %v852
    %1412 = vmatpush1.bf16.msra.mxu0 %v851
    %1413 = vmatprep.subr.bf16.mxu0 %v848
    %1414 = vmatpush1.bf16.msra.mxu0 %v847
    %1415 = vmatprep.subr.bf16.mxu0 %v844
    %1416 = vmatpush1.bf16.msra.mxu0 %v843
    %1417 = vmatprep.subr.bf16.mxu0 %v840
    %1418 = vmatpush1.bf16.msra.mxu0 %v839
    %1419 = vmatprep.subr.bf16.mxu0 %v836
    %1420 = vmatpush1.bf16.msra.mxu0 %v835
    %1421 = vmatprep.subr.bf16.mxu0 %v832
    %1422 = vmatpush1.bf16.msra.mxu0 %v831
    %1423 = vmatprep.subr.bf16.mxu0 %v892
    %1424 = vmatpush2.bf16.msra.mxu0 %v891
    %1425 = vmatprep.subr.bf16.mxu0 %v888
    %1426 = vmatpush2.bf16.msra.mxu0 %v887
    %1427 = vmatprep.subr.bf16.mxu0 %v884
    %1428 = vmatpush2.bf16.msra.mxu0 %v883
    %1429 = vmatprep.subr.bf16.mxu0 %v880
    %1430 = vmatpush2.bf16.msra.mxu0 %v879
    %1431 = vmatprep.subr.bf16.mxu0 %v876
    %1432 = vmatpush2.bf16.msra.mxu0 %v875
    %1433 = vmatprep.subr.bf16.mxu0 %v872
    %1434 = vmatpush2.bf16.msra.mxu0 %v871
    %1435 = vmatprep.subr.bf16.mxu0 %v868
    %1436 = vmatpush2.bf16.msra.mxu0 %v867
    %1437 = vmatprep.subr.bf16.mxu0 %v864
    %1438 = vmatpush2.bf16.msra.mxu0 %v863
    %1439 = vmatprep.mubr.bf16.mxu0 %v398
    %1440 = vmatmul.mubr.bf16.gmra.mxu0 %v397
    %v1441 = vpop.f32.mrf.mxu0
    %v1442 = vadd.f32 0.0, %v1441
    %v1443 = vpop.f32.mrf.mxu0
    %v1444 = vadd.f32 0.0, %v1443
    %v1445 = vpop.f32.mrf.mxu0
    %v1446 = vadd.f32 0.0, %v1445
    %v1447 = vpop.f32.mrf.mxu0
    %v1448 = vadd.f32 0.0, %v1447
    %1449 = vmatprep.mubr.bf16.mxu0 %v401
    %1450 = vmatmul.mubr.bf16.gmra.mxu0 %v400
    %v1451 = vpop.f32.mrf.mxu0
    %v1452 = vadd.f32 0.0, %v1451
    %v1453 = vpop.f32.mrf.mxu0
    %v1454 = vadd.f32 0.0, %v1453
    %v1455 = vpop.f32.mrf.mxu0
    %v1456 = vadd.f32 0.0, %v1455
    %v1457 = vpop.f32.mrf.mxu0
    %v1458 = vadd.f32 0.0, %v1457
    %1459 = vmatprep.mubr.bf16.mxu0 %v404
    %1460 = vmatmul.mubr.bf16.gmra.mxu0 %v403
    %v1461 = vpop.f32.mrf.mxu0
    %v1462 = vadd.f32 0.0, %v1461
    %v1463 = vpop.f32.mrf.mxu0
    %v1464 = vadd.f32 0.0, %v1463
    %v1465 = vpop.f32.mrf.mxu0
    %v1466 = vadd.f32 0.0, %v1465
    %v1467 = vpop.f32.mrf.mxu0
    %v1468 = vadd.f32 0.0, %v1467
    %1469 = vmatprep.mubr.bf16.mxu0 %v407
    %1470 = vmatmul.mubr.bf16.gmra.mxu0 %v406
    %v1471 = vpop.f32.mrf.mxu0
    %v1472 = vadd.f32 0.0, %v1471
    %v1473 = vpop.f32.mrf.mxu0
    %v1474 = vadd.f32 0.0, %v1473
    %v1475 = vpop.f32.mrf.mxu0
    %v1476 = vadd.f32 0.0, %v1475
    %v1477 = vpop.f32.mrf.mxu0
    %v1478 = vadd.f32 0.0, %v1477
    %1479 = vmatprep.mubr.bf16.mxu0 %v410
    %1480 = vmatmul.mubr.bf16.gmra.mxu0 %v409
    %v1481 = vpop.f32.mrf.mxu0
    %v1482 = vadd.f32 0.0, %v1481
    %v1483 = vpop.f32.mrf.mxu0
    %v1484 = vadd.f32 0.0, %v1483
    %v1485 = vpop.f32.mrf.mxu0
    %v1486 = vadd.f32 0.0, %v1485
    %v1487 = vpop.f32.mrf.mxu0
    %v1488 = vadd.f32 0.0, %v1487
    %1489 = vmatprep.mubr.bf16.mxu0 %v413
    %1490 = vmatmul.mubr.bf16.gmra.mxu0 %v412
    %v1491 = vpop.f32.mrf.mxu0
    %v1492 = vadd.f32 0.0, %v1491
    %v1493 = vpop.f32.mrf.mxu0
    %v1494 = vadd.f32 0.0, %v1493
    %v1495 = vpop.f32.mrf.mxu0
    %v1496 = vadd.f32 0.0, %v1495
    %v1497 = vpop.f32.mrf.mxu0
    %v1498 = vadd.f32 0.0, %v1497
    %1499 = vmatprep.mubr.bf16.mxu0 %v416
    %1500 = vmatmul.mubr.bf16.gmra.mxu0 %v415
    %v1501 = vpop.f32.mrf.mxu0
    %v1502 = vadd.f32 0.0, %v1501
    %v1503 = vpop.f32.mrf.mxu0
    %v1504 = vadd.f32 0.0, %v1503
    %v1505 = vpop.f32.mrf.mxu0
    %v1506 = vadd.f32 0.0, %v1505
    %v1507 = vpop.f32.mrf.mxu0
    %v1508 = vadd.f32 0.0, %v1507
    %1509 = vmatprep.mubr.bf16.mxu0 %v419
    %1510 = vmatmul.mubr.bf16.gmra.mxu0 %v418
    %v1511 = vpop.f32.mrf.mxu0
    %v1512 = vadd.f32 0.0, %v1511
    %v1513 = vpop.f32.mrf.mxu0
    %v1514 = vadd.f32 0.0, %v1513
    %v1515 = vpop.f32.mrf.mxu0
    %v1516 = vadd.f32 0.0, %v1515
    %v1517 = vpop.f32.mrf.mxu0
    %v1518 = vadd.f32 0.0, %v1517
    %1519 = vmatprep.mubr.bf16.mxu0 %v422
    %1520 = vmatmul.mubr.bf16.gmra.mxu0 %v421
    %v1521 = vpop.f32.mrf.mxu0
    %v1522 = vadd.f32 0.0, %v1521
    %v1523 = vpop.f32.mrf.mxu0
    %v1524 = vadd.f32 0.0, %v1523
    %v1525 = vpop.f32.mrf.mxu0
    %v1526 = vadd.f32 0.0, %v1525
    %v1527 = vpop.f32.mrf.mxu0
    %v1528 = vadd.f32 0.0, %v1527
    %1529 = vmatprep.mubr.bf16.mxu0 %v425
    %1530 = vmatmul.mubr.bf16.gmra.mxu0 %v424
    %v1531 = vpop.f32.mrf.mxu0
    %v1532 = vadd.f32 0.0, %v1531
    %v1533 = vpop.f32.mrf.mxu0
    %v1534 = vadd.f32 0.0, %v1533
    %v1535 = vpop.f32.mrf.mxu0
    %v1536 = vadd.f32 0.0, %v1535
    %v1537 = vpop.f32.mrf.mxu0
    %v1538 = vadd.f32 0.0, %v1537
    %1539 = vmatprep.mubr.bf16.mxu0 %v428
    %1540 = vmatmul.mubr.bf16.gmra.mxu0 %v427
    %v1541 = vpop.f32.mrf.mxu0
    %v1542 = vadd.f32 0.0, %v1541
    %v1543 = vpop.f32.mrf.mxu0
    %v1544 = vadd.f32 0.0, %v1543
    %v1545 = vpop.f32.mrf.mxu0
    %v1546 = vadd.f32 0.0, %v1545
    %v1547 = vpop.f32.mrf.mxu0
    %v1548 = vadd.f32 0.0, %v1547
    %1549 = vmatprep.mubr.bf16.mxu0 %v431
    %1550 = vmatmul.mubr.bf16.gmra.mxu0 %v430
    %v1551 = vpop.f32.mrf.mxu0
    %v1552 = vadd.f32 0.0, %v1551
    %v1553 = vpop.f32.mrf.mxu0
    %v1554 = vadd.f32 0.0, %v1553
    %v1555 = vpop.f32.mrf.mxu0
    %v1556 = vadd.f32 0.0, %v1555
    %v1557 = vpop.f32.mrf.mxu0
    %v1558 = vadd.f32 0.0, %v1557
    %1559 = vmatprep.mubr.bf16.mxu0 %v434
    %1560 = vmatmul.mubr.bf16.gmra.mxu0 %v433
    %v1561 = vpop.f32.mrf.mxu0
    %v1562 = vadd.f32 0.0, %v1561
    %v1563 = vpop.f32.mrf.mxu0
    %v1564 = vadd.f32 0.0, %v1563
    %v1565 = vpop.f32.mrf.mxu0
    %v1566 = vadd.f32 0.0, %v1565
    %v1567 = vpop.f32.mrf.mxu0
    %v1568 = vadd.f32 0.0, %v1567
    %1569 = vmatprep.mubr.bf16.mxu0 %v437
    %1570 = vmatmul.mubr.bf16.gmra.mxu0 %v436
    %v1571 = vpop.f32.mrf.mxu0
    %v1572 = vadd.f32 0.0, %v1571
    %v1573 = vpop.f32.mrf.mxu0
    %v1574 = vadd.f32 0.0, %v1573
    %v1575 = vpop.f32.mrf.mxu0
    %v1576 = vadd.f32 0.0, %v1575
    %v1577 = vpop.f32.mrf.mxu0
    %v1578 = vadd.f32 0.0, %v1577
    %1579 = vmatprep.mubr.bf16.mxu0 %v440
    %1580 = vmatmul.mubr.bf16.gmra.mxu0 %v439
    %v1581 = vpop.f32.mrf.mxu0
    %v1582 = vadd.f32 0.0, %v1581
    %v1583 = vpop.f32.mrf.mxu0
    %v1584 = vadd.f32 0.0, %v1583
    %v1585 = vpop.f32.mrf.mxu0
    %v1586 = vadd.f32 0.0, %v1585
    %v1587 = vpop.f32.mrf.mxu0
    %v1588 = vadd.f32 0.0, %v1587
    %1589 = vmatprep.mubr.bf16.mxu0 %v443
    %1590 = vmatmul.mubr.bf16.gmra.mxu0 %v442
    %v1591 = vpop.f32.mrf.mxu0
    %v1592 = vadd.f32 0.0, %v1591
    %v1593 = vpop.f32.mrf.mxu0
    %v1594 = vadd.f32 0.0, %v1593
    %v1595 = vpop.f32.mrf.mxu0
    %v1596 = vadd.f32 0.0, %v1595
    %v1597 = vpop.f32.mrf.mxu0
    %v1598 = vadd.f32 0.0, %v1597
    %1599 = vdwg.mxu0
    %1600 = vmatprep.subr.bf16.mxu0 %v924
    %1601 = vmatpush1.bf16.msra.mxu0 %v923
    %1602 = vmatprep.subr.bf16.mxu0 %v920
    %1603 = vmatpush1.bf16.msra.mxu0 %v919
    %1604 = vmatprep.subr.bf16.mxu0 %v916
    %1605 = vmatpush1.bf16.msra.mxu0 %v915
    %1606 = vmatprep.subr.bf16.mxu0 %v912
    %1607 = vmatpush1.bf16.msra.mxu0 %v911
    %1608 = vmatprep.subr.bf16.mxu0 %v908
    %1609 = vmatpush1.bf16.msra.mxu0 %v907
    %1610 = vmatprep.subr.bf16.mxu0 %v904
    %1611 = vmatpush1.bf16.msra.mxu0 %v903
    %1612 = vmatprep.subr.bf16.mxu0 %v900
    %1613 = vmatpush1.bf16.msra.mxu0 %v899
    %1614 = vmatprep.subr.bf16.mxu0 %v896
    %1615 = vmatpush1.bf16.msra.mxu0 %v895
    %1616 = vmatprep.subr.bf16.mxu0 0
    %1617 = vmatpush2.bf16.msra.mxu0 0
    %1618 = vmatprep.subr.bf16.mxu0 0
    %1619 = vmatpush2.bf16.msra.mxu0 0
    %1620 = vmatprep.subr.bf16.mxu0 0
    %1621 = vmatpush2.bf16.msra.mxu0 0
    %1622 = vmatprep.subr.bf16.mxu0 0
    %1623 = vmatpush2.bf16.msra.mxu0 0
    %1624 = vmatprep.subr.bf16.mxu0 0
    %1625 = vmatpush2.bf16.msra.mxu0 0
    %1626 = vmatprep.subr.bf16.mxu0 0
    %1627 = vmatpush2.bf16.msra.mxu0 0
    %1628 = vmatprep.subr.bf16.mxu0 0
    %1629 = vmatpush2.bf16.msra.mxu0 0
    %1630 = vmatprep.subr.bf16.mxu0 0
    %1631 = vmatpush2.bf16.msra.mxu0 0
    %1632 = vmatprep.mubr.bf16.mxu0 0
    %1633 = vmatmul.mubr.bf16.gmra.mxu0 %v399
    %v1634 = vpop.f32.mrf.mxu0
    %v1635 = vadd.f32 %v1442, %v1634
    %v1636 = vpop.f32.mrf.mxu0
    %v1637 = vadd.f32 %v1444, %v1636
    %v1638 = vpop.f32.mrf.mxu0
    %v1639 = vadd.f32 %v1446, %v1638
    %v1640 = vpop.f32.mrf.mxu0
    %v1641 = vadd.f32 %v1448, %v1640
    %1642 = vmatprep.mubr.bf16.mxu0 0
    %1643 = vmatmul.mubr.bf16.gmra.mxu0 %v402
    %v1644 = vpop.f32.mrf.mxu0
    %v1645 = vadd.f32 %v1452, %v1644
    %v1646 = vpop.f32.mrf.mxu0
    %v1647 = vadd.f32 %v1454, %v1646
    %v1648 = vpop.f32.mrf.mxu0
    %v1649 = vadd.f32 %v1456, %v1648
    %v1650 = vpop.f32.mrf.mxu0
    %v1651 = vadd.f32 %v1458, %v1650
    %1652 = vmatprep.mubr.bf16.mxu0 0
    %1653 = vmatmul.mubr.bf16.gmra.mxu0 %v405
    %v1654 = vpop.f32.mrf.mxu0
    %v1655 = vadd.f32 %v1462, %v1654
    %v1656 = vpop.f32.mrf.mxu0
    %v1657 = vadd.f32 %v1464, %v1656
    %v1658 = vpop.f32.mrf.mxu0
    %v1659 = vadd.f32 %v1466, %v1658
    %v1660 = vpop.f32.mrf.mxu0
    %v1661 = vadd.f32 %v1468, %v1660
    %1662 = vmatprep.mubr.bf16.mxu0 0
    %1663 = vmatmul.mubr.bf16.gmra.mxu0 %v408
    %v1664 = vpop.f32.mrf.mxu0
    %v1665 = vadd.f32 %v1472, %v1664
    %v1666 = vpop.f32.mrf.mxu0
    %v1667 = vadd.f32 %v1474, %v1666
    %v1668 = vpop.f32.mrf.mxu0
    %v1669 = vadd.f32 %v1476, %v1668
    %v1670 = vpop.f32.mrf.mxu0
    %v1671 = vadd.f32 %v1478, %v1670
    %1672 = vmatprep.mubr.bf16.mxu0 0
    %1673 = vmatmul.mubr.bf16.gmra.mxu0 %v411
    %v1674 = vpop.f32.mrf.mxu0
    %v1675 = vadd.f32 %v1482, %v1674
    %v1676 = vpop.f32.mrf.mxu0
    %v1677 = vadd.f32 %v1484, %v1676
    %v1678 = vpop.f32.mrf.mxu0
    %v1679 = vadd.f32 %v1486, %v1678
    %v1680 = vpop.f32.mrf.mxu0
    %v1681 = vadd.f32 %v1488, %v1680
    %1682 = vmatprep.mubr.bf16.mxu0 0
    %1683 = vmatmul.mubr.bf16.gmra.mxu0 %v414
    %v1684 = vpop.f32.mrf.mxu0
    %v1685 = vadd.f32 %v1492, %v1684
    %v1686 = vpop.f32.mrf.mxu0
    %v1687 = vadd.f32 %v1494, %v1686
    %v1688 = vpop.f32.mrf.mxu0
    %v1689 = vadd.f32 %v1496, %v1688
    %v1690 = vpop.f32.mrf.mxu0
    %v1691 = vadd.f32 %v1498, %v1690
    %1692 = vmatprep.mubr.bf16.mxu0 0
    %1693 = vmatmul.mubr.bf16.gmra.mxu0 %v417
    %v1694 = vpop.f32.mrf.mxu0
    %v1695 = vadd.f32 %v1502, %v1694
    %v1696 = vpop.f32.mrf.mxu0
    %v1697 = vadd.f32 %v1504, %v1696
    %v1698 = vpop.f32.mrf.mxu0
    %v1699 = vadd.f32 %v1506, %v1698
    %v1700 = vpop.f32.mrf.mxu0
    %v1701 = vadd.f32 %v1508, %v1700
    %1702 = vmatprep.mubr.bf16.mxu0 0
    %1703 = vmatmul.mubr.bf16.gmra.mxu0 %v420
    %v1704 = vpop.f32.mrf.mxu0
    %v1705 = vadd.f32 %v1512, %v1704
    %v1706 = vpop.f32.mrf.mxu0
    %v1707 = vadd.f32 %v1514, %v1706
    %v1708 = vpop.f32.mrf.mxu0
    %v1709 = vadd.f32 %v1516, %v1708
    %v1710 = vpop.f32.mrf.mxu0
    %v1711 = vadd.f32 %v1518, %v1710
    %1712 = vmatprep.mubr.bf16.mxu0 0
    %1713 = vmatmul.mubr.bf16.gmra.mxu0 %v423
    %v1714 = vpop.f32.mrf.mxu0
    %v1715 = vadd.f32 %v1522, %v1714
    %v1716 = vpop.f32.mrf.mxu0
    %v1717 = vadd.f32 %v1524, %v1716
    %v1718 = vpop.f32.mrf.mxu0
    %v1719 = vadd.f32 %v1526, %v1718
    %v1720 = vpop.f32.mrf.mxu0
    %v1721 = vadd.f32 %v1528, %v1720
    %1722 = vmatprep.mubr.bf16.mxu0 0
    %1723 = vmatmul.mubr.bf16.gmra.mxu0 %v426
    %v1724 = vpop.f32.mrf.mxu0
    %v1725 = vadd.f32 %v1532, %v1724
    %v1726 = vpop.f32.mrf.mxu0
    %v1727 = vadd.f32 %v1534, %v1726
    %v1728 = vpop.f32.mrf.mxu0
    %v1729 = vadd.f32 %v1536, %v1728
    %v1730 = vpop.f32.mrf.mxu0
    %v1731 = vadd.f32 %v1538, %v1730
    %1732 = vmatprep.mubr.bf16.mxu0 0
    %1733 = vmatmul.mubr.bf16.gmra.mxu0 %v429
    %v1734 = vpop.f32.mrf.mxu0
    %v1735 = vadd.f32 %v1542, %v1734
    %v1736 = vpop.f32.mrf.mxu0
    %v1737 = vadd.f32 %v1544, %v1736
    %v1738 = vpop.f32.mrf.mxu0
    %v1739 = vadd.f32 %v1546, %v1738
    %v1740 = vpop.f32.mrf.mxu0
    %v1741 = vadd.f32 %v1548, %v1740
    %1742 = vmatprep.mubr.bf16.mxu0 0
    %1743 = vmatmul.mubr.bf16.gmra.mxu0 %v432
    %v1744 = vpop.f32.mrf.mxu0
    %v1745 = vadd.f32 %v1552, %v1744
    %v1746 = vpop.f32.mrf.mxu0
    %v1747 = vadd.f32 %v1554, %v1746
    %v1748 = vpop.f32.mrf.mxu0
    %v1749 = vadd.f32 %v1556, %v1748
    %v1750 = vpop.f32.mrf.mxu0
    %v1751 = vadd.f32 %v1558, %v1750
    %1752 = vmatprep.mubr.bf16.mxu0 0
    %1753 = vmatmul.mubr.bf16.gmra.mxu0 %v435
    %v1754 = vpop.f32.mrf.mxu0
    %v1755 = vadd.f32 %v1562, %v1754
    %v1756 = vpop.f32.mrf.mxu0
    %v1757 = vadd.f32 %v1564, %v1756
    %v1758 = vpop.f32.mrf.mxu0
    %v1759 = vadd.f32 %v1566, %v1758
    %v1760 = vpop.f32.mrf.mxu0
    %v1761 = vadd.f32 %v1568, %v1760
    %1762 = vmatprep.mubr.bf16.mxu0 0
    %1763 = vmatmul.mubr.bf16.gmra.mxu0 %v438
    %v1764 = vpop.f32.mrf.mxu0
    %v1765 = vadd.f32 %v1572, %v1764
    %v1766 = vpop.f32.mrf.mxu0
    %v1767 = vadd.f32 %v1574, %v1766
    %v1768 = vpop.f32.mrf.mxu0
    %v1769 = vadd.f32 %v1576, %v1768
    %v1770 = vpop.f32.mrf.mxu0
    %v1771 = vadd.f32 %v1578, %v1770
    %1772 = vmatprep.mubr.bf16.mxu0 0
    %1773 = vmatmul.mubr.bf16.gmra.mxu0 %v441
    %v1774 = vpop.f32.mrf.mxu0
    %v1775 = vadd.f32 %v1582, %v1774
    %v1776 = vpop.f32.mrf.mxu0
    %v1777 = vadd.f32 %v1584, %v1776
    %v1778 = vpop.f32.mrf.mxu0
    %v1779 = vadd.f32 %v1586, %v1778
    %v1780 = vpop.f32.mrf.mxu0
    %v1781 = vadd.f32 %v1588, %v1780
    %1782 = vmatprep.mubr.bf16.mxu0 0
    %1783 = vmatmul.mubr.bf16.gmra.mxu0 %v444
    %v1784 = vpop.f32.mrf.mxu0
    %v1785 = vadd.f32 %v1592, %v1784
    %v1786 = vpop.f32.mrf.mxu0
    %v1787 = vadd.f32 %v1594, %v1786
    %v1788 = vpop.f32.mrf.mxu0
    %v1789 = vadd.f32 %v1596, %v1788
    %v1790 = vpop.f32.mrf.mxu0
    %v1791 = vadd.f32 %v1598, %v1790
    %1792 = vdwg.mxu0
    %v1793 = vadd.f32 %v173, %v1249
    %v1794 = vadd.f32 %v174, %v1251
    %v1795 = vadd.f32 %v175, %v1635
    %v1796 = vadd.f32 %v176, %v1637
    %v1797 = vadd.f32 %v177, %v1253
    %v1798 = vadd.f32 %v178, %v1255
    %v1799 = vadd.f32 %v179, %v1639
    %v1800 = vadd.f32 %v180, %v1641
    %v1801 = vadd.f32 %v181, %v1259
    %v1802 = vadd.f32 %v182, %v1261
    %v1803 = vadd.f32 %v183, %v1645
    %v1804 = vadd.f32 %v184, %v1647
    %v1805 = vadd.f32 %v185, %v1263
    %v1806 = vadd.f32 %v186, %v1265
    %v1807 = vadd.f32 %v187, %v1649
    %v1808 = vadd.f32 %v188, %v1651
    %v1809 = vadd.f32 %v189, %v1269
    %v1810 = vadd.f32 %v190, %v1271
    %v1811 = vadd.f32 %v191, %v1655
    %v1812 = vadd.f32 %v192, %v1657
    %v1813 = vadd.f32 %v193, %v1273
    %v1814 = vadd.f32 %v194, %v1275
    %v1815 = vadd.f32 %v195, %v1659
    %v1816 = vadd.f32 %v196, %v1661
    %v1817 = vadd.f32 %v197, %v1279
    %v1818 = vadd.f32 %v198, %v1281
    %v1819 = vadd.f32 %v199, %v1665
    %v1820 = vadd.f32 %v200, %v1667
    %v1821 = vadd.f32 %v201, %v1283
    %v1822 = vadd.f32 %v202, %v1285
    %v1823 = vadd.f32 %v203, %v1669
    %v1824 = vadd.f32 %v204, %v1671
    %v1825 = vadd.f32 %v205, %v1289
    %v1826 = vadd.f32 %v206, %v1291
    %v1827 = vadd.f32 %v207, %v1675
    %v1828 = vadd.f32 %v208, %v1677
    %v1829 = vadd.f32 %v209, %v1293
    %v1830 = vadd.f32 %v210, %v1295
    %v1831 = vadd.f32 %v211, %v1679
    %v1832 = vadd.f32 %v212, %v1681
    %v1833 = vadd.f32 %v213, %v1299
    %v1834 = vadd.f32 %v214, %v1301
    %v1835 = vadd.f32 %v215, %v1685
    %v1836 = vadd.f32 %v216, %v1687
    %v1837 = vadd.f32 %v217, %v1303
    %v1838 = vadd.f32 %v218, %v1305
    %v1839 = vadd.f32 %v219, %v1689
    %v1840 = vadd.f32 %v220, %v1691
    %v1841 = vadd.f32 %v221, %v1309
    %v1842 = vadd.f32 %v222, %v1311
    %v1843 = vadd.f32 %v223, %v1695
    %v1844 = vadd.f32 %v224, %v1697
    %v1845 = vadd.f32 %v225, %v1313
    %v1846 = vadd.f32 %v226, %v1315
    %v1847 = vadd.f32 %v227, %v1699
    %v1848 = vadd.f32 %v228, %v1701
    %v1849 = vadd.f32 %v229, %v1319
    %v1850 = vadd.f32 %v230, %v1321
    %v1851 = vadd.f32 %v231, %v1705
    %v1852 = vadd.f32 %v232, %v1707
    %v1853 = vadd.f32 %v233, %v1323
    %v1854 = vadd.f32 %v234, %v1325
    %v1855 = vadd.f32 %v235, %v1709
    %v1856 = vadd.f32 %v236, %v1711
    %v1857 = vadd.f32 %v237, %v1329
    %v1858 = vadd.f32 %v238, %v1331
    %v1859 = vadd.f32 %v239, %v1715
    %v1860 = vadd.f32 %v240, %v1717
    %v1861 = vadd.f32 %v241, %v1333
    %v1862 = vadd.f32 %v242, %v1335
    %v1863 = vadd.f32 %v243, %v1719
    %v1864 = vadd.f32 %v244, %v1721
    %v1865 = vadd.f32 %v245, %v1339
    %v1866 = vadd.f32 %v246, %v1341
    %v1867 = vadd.f32 %v247, %v1725
    %v1868 = vadd.f32 %v248, %v1727
    %v1869 = vadd.f32 %v249, %v1343
    %v1870 = vadd.f32 %v250, %v1345
    %v1871 = vadd.f32 %v251, %v1729
    %v1872 = vadd.f32 %v252, %v1731
    %v1873 = vadd.f32 %v253, %v1349
    %v1874 = vadd.f32 %v254, %v1351
    %v1875 = vadd.f32 %v255, %v1735
    %v1876 = vadd.f32 %v256, %v1737
    %v1877 = vadd.f32 %v257, %v1353
    %v1878 = vadd.f32 %v258, %v1355
    %v1879 = vadd.f32 %v259, %v1739
    %v1880 = vadd.f32 %v260, %v1741
    %v1881 = vadd.f32 %v261, %v1359
    %v1882 = vadd.f32 %v262, %v1361
    %v1883 = vadd.f32 %v263, %v1745
    %v1884 = vadd.f32 %v264, %v1747
    %v1885 = vadd.f32 %v265, %v1363
    %v1886 = vadd.f32 %v266, %v1365
    %v1887 = vadd.f32 %v267, %v1749
    %v1888 = vadd.f32 %v268, %v1751
    %v1889 = vadd.f32 %v269, %v1369
    %v1890 = vadd.f32 %v270, %v1371
    %v1891 = vadd.f32 %v271, %v1755
    %v1892 = vadd.f32 %v272, %v1757
    %v1893 = vadd.f32 %v273, %v1373
    %v1894 = vadd.f32 %v274, %v1375
    %v1895 = vadd.f32 %v275, %v1759
    %v1896 = vadd.f32 %v276, %v1761
    %v1897 = vadd.f32 %v277, %v1379
    %v1898 = vadd.f32 %v278, %v1381
    %v1899 = vadd.f32 %v279, %v1765
    %v1900 = vadd.f32 %v280, %v1767
    %v1901 = vadd.f32 %v281, %v1383
    %v1902 = vadd.f32 %v282, %v1385
    %v1903 = vadd.f32 %v283, %v1769
    %v1904 = vadd.f32 %v284, %v1771
    %v1905 = vadd.f32 %v285, %v1389
    %v1906 = vadd.f32 %v286, %v1391
    %v1907 = vadd.f32 %v287, %v1775
    %v1908 = vadd.f32 %v288, %v1777
    %v1909 = vadd.f32 %v289, %v1393
    %v1910 = vadd.f32 %v290, %v1395
    %v1911 = vadd.f32 %v291, %v1779
    %v1912 = vadd.f32 %v292, %v1781
    %v1913 = vadd.f32 %v293, %v1399
    %v1914 = vadd.f32 %v294, %v1401
    %v1915 = vadd.f32 %v295, %v1785
    %v1916 = vadd.f32 %v296, %v1787
    %v1917 = vadd.f32 %v297, %v1403
    %v1918 = vadd.f32 %v298, %v1405
    %v1919 = vadd.f32 %v299, %v1789
    %v1920 = vadd.f32 %v300, %v1791
    %1921 = vst [vmem:[#allocation7] sm:$0xff] %v1793
    %1922 = vst [vmem:[#allocation7 + $0x8] sm:$0xff] %v1794
    %1923 = vst [vmem:[#allocation7 + $0x10] sm:$0xff] %v1795
    %1924 = vst [vmem:[#allocation7 + $0x18] sm:$0xff] %v1796
    %1925 = vst [vmem:[#allocation7 + $0x20] sm:$0xff] %v1797
    %1926 = vst [vmem:[#allocation7 + $0x28] sm:$0xff] %v1798
    %1927 = vst [vmem:[#allocation7 + $0x30] sm:$0xff] %v1799
    %1928 = vst [vmem:[#allocation7 + $0x38] sm:$0xff] %v1800
    %1929 = vst [vmem:[#allocation7 + $0x40] sm:$0xff] %v1801
    %1930 = vst [vmem:[#allocation7 + $0x48] sm:$0xff] %v1802
    %1931 = vst [vmem:[#allocation7 + $0x50] sm:$0xff] %v1803
    %1932 = vst [vmem:[#allocation7 + $0x58] sm:$0xff] %v1804
    %1933 = vst [vmem:[#allocation7 + $0x60] sm:$0xff] %v1805
    %1934 = vst [vmem:[#allocation7 + $0x68] sm:$0xff] %v1806
    %1935 = vst [vmem:[#allocation7 + $0x70] sm:$0xff] %v1807
    %1936 = vst [vmem:[#allocation7 + $0x78] sm:$0xff] %v1808
    %1937 = vst [vmem:[#allocation7 + $0x80] sm:$0xff] %v1809
    %1938 = vst [vmem:[#allocation7 + $0x88] sm:$0xff] %v1810
    %1939 = vst [vmem:[#allocation7 + $0x90] sm:$0xff] %v1811
    %1940 = vst [vmem:[#allocation7 + $0x98] sm:$0xff] %v1812
    %1941 = vst [vmem:[#allocation7 + $0xa0] sm:$0xff] %v1813
    %1942 = vst [vmem:[#allocation7 + $0xa8] sm:$0xff] %v1814
    %1943 = vst [vmem:[#allocation7 + $0xb0] sm:$0xff] %v1815
    %1944 = vst [vmem:[#allocation7 + $0xb8] sm:$0xff] %v1816
    %1945 = vst [vmem:[#allocation7 + $0xc0] sm:$0xff] %v1817
    %1946 = vst [vmem:[#allocation7 + $0xc8] sm:$0xff] %v1818
    %1947 = vst [vmem:[#allocation7 + $0xd0] sm:$0xff] %v1819
    %1948 = vst [vmem:[#allocation7 + $0xd8] sm:$0xff] %v1820
    %1949 = vst [vmem:[#allocation7 + $0xe0] sm:$0xff] %v1821
    %1950 = vst [vmem:[#allocation7 + $0xe8] sm:$0xff] %v1822
    %1951 = vst [vmem:[#allocation7 + $0xf0] sm:$0xff] %v1823
    %1952 = vst [vmem:[#allocation7 + $0xf8] sm:$0xff] %v1824
    %1953 = vst [vmem:[#allocation7 + $0x100] sm:$0xff] %v1825
    %1954 = vst [vmem:[#allocation7 + $0x108] sm:$0xff] %v1826
    %1955 = vst [vmem:[#allocation7 + $0x110] sm:$0xff] %v1827
    %1956 = vst [vmem:[#allocation7 + $0x118] sm:$0xff] %v1828
    %1957 = vst [vmem:[#allocation7 + $0x120] sm:$0xff] %v1829
    %1958 = vst [vmem:[#allocation7 + $0x128] sm:$0xff] %v1830
    %1959 = vst [vmem:[#allocation7 + $0x130] sm:$0xff] %v1831
    %1960 = vst [vmem:[#allocation7 + $0x138] sm:$0xff] %v1832
    %1961 = vst [vmem:[#allocation7 + $0x140] sm:$0xff] %v1833
    %1962 = vst [vmem:[#allocation7 + $0x148] sm:$0xff] %v1834
    %1963 = vst [vmem:[#allocation7 + $0x150] sm:$0xff] %v1835
    %1964 = vst [vmem:[#allocation7 + $0x158] sm:$0xff] %v1836
    %1965 = vst [vmem:[#allocation7 + $0x160] sm:$0xff] %v1837
    %1966 = vst [vmem:[#allocation7 + $0x168] sm:$0xff] %v1838
    %1967 = vst [vmem:[#allocation7 + $0x170] sm:$0xff] %v1839
    %1968 = vst [vmem:[#allocation7 + $0x178] sm:$0xff] %v1840
    %1969 = vst [vmem:[#allocation7 + $0x180] sm:$0xff] %v1841
    %1970 = vst [vmem:[#allocation7 + $0x188] sm:$0xff] %v1842
    %1971 = vst [vmem:[#allocation7 + $0x190] sm:$0xff] %v1843
    %1972 = vst [vmem:[#allocation7 + $0x198] sm:$0xff] %v1844
    %1973 = vst [vmem:[#allocation7 + $0x1a0] sm:$0xff] %v1845
    %1974 = vst [vmem:[#allocation7 + $0x1a8] sm:$0xff] %v1846
    %1975 = vst [vmem:[#allocation7 + $0x1b0] sm:$0xff] %v1847
    %1976 = vst [vmem:[#allocation7 + $0x1b8] sm:$0xff] %v1848
    %1977 = vst [vmem:[#allocation7 + $0x1c0] sm:$0xff] %v1849
    %1978 = vst [vmem:[#allocation7 + $0x1c8] sm:$0xff] %v1850
    %1979 = vst [vmem:[#allocation7 + $0x1d0] sm:$0xff] %v1851
    %1980 = vst [vmem:[#allocation7 + $0x1d8] sm:$0xff] %v1852
    %1981 = vst [vmem:[#allocation7 + $0x1e0] sm:$0xff] %v1853
    %1982 = vst [vmem:[#allocation7 + $0x1e8] sm:$0xff] %v1854
    %1983 = vst [vmem:[#allocation7 + $0x1f0] sm:$0xff] %v1855
    %1984 = vst [vmem:[#allocation7 + $0x1f8] sm:$0xff] %v1856
    %1985 = vst [vmem:[#allocation7 + $0x200] sm:$0xff] %v1857
    %1986 = vst [vmem:[#allocation7 + $0x208] sm:$0xff] %v1858
    %1987 = vst [vmem:[#allocation7 + $0x210] sm:$0xff] %v1859
    %1988 = vst [vmem:[#allocation7 + $0x218] sm:$0xff] %v1860
    %1989 = vst [vmem:[#allocation7 + $0x220] sm:$0xff] %v1861
    %1990 = vst [vmem:[#allocation7 + $0x228] sm:$0xff] %v1862
    %1991 = vst [vmem:[#allocation7 + $0x230] sm:$0xff] %v1863
    %1992 = vst [vmem:[#allocation7 + $0x238] sm:$0xff] %v1864
    %1993 = vst [vmem:[#allocation7 + $0x240] sm:$0xff] %v1865
    %1994 = vst [vmem:[#allocation7 + $0x248] sm:$0xff] %v1866
    %1995 = vst [vmem:[#allocation7 + $0x250] sm:$0xff] %v1867
    %1996 = vst [vmem:[#allocation7 + $0x258] sm:$0xff] %v1868
    %1997 = vst [vmem:[#allocation7 + $0x260] sm:$0xff] %v1869
    %1998 = vst [vmem:[#allocation7 + $0x268] sm:$0xff] %v1870
    %1999 = vst [vmem:[#allocation7 + $0x270] sm:$0xff] %v1871
    %2000 = vst [vmem:[#allocation7 + $0x278] sm:$0xff] %v1872
    %2001 = vst [vmem:[#allocation7 + $0x280] sm:$0xff] %v1873
    %2002 = vst [vmem:[#allocation7 + $0x288] sm:$0xff] %v1874
    %2003 = vst [vmem:[#allocation7 + $0x290] sm:$0xff] %v1875
    %2004 = vst [vmem:[#allocation7 + $0x298] sm:$0xff] %v1876
    %2005 = vst [vmem:[#allocation7 + $0x2a0] sm:$0xff] %v1877
    %2006 = vst [vmem:[#allocation7 + $0x2a8] sm:$0xff] %v1878
    %2007 = vst [vmem:[#allocation7 + $0x2b0] sm:$0xff] %v1879
    %2008 = vst [vmem:[#allocation7 + $0x2b8] sm:$0xff] %v1880
    %2009 = vst [vmem:[#allocation7 + $0x2c0] sm:$0xff] %v1881
    %2010 = vst [vmem:[#allocation7 + $0x2c8] sm:$0xff] %v1882
    %2011 = vst [vmem:[#allocation7 + $0x2d0] sm:$0xff] %v1883
    %2012 = vst [vmem:[#allocation7 + $0x2d8] sm:$0xff] %v1884
    %2013 = vst [vmem:[#allocation7 + $0x2e0] sm:$0xff] %v1885
    %2014 = vst [vmem:[#allocation7 + $0x2e8] sm:$0xff] %v1886
    %2015 = vst [vmem:[#allocation7 + $0x2f0] sm:$0xff] %v1887
    %2016 = vst [vmem:[#allocation7 + $0x2f8] sm:$0xff] %v1888
    %2017 = vst [vmem:[#allocation7 + $0x300] sm:$0xff] %v1889
    %2018 = vst [vmem:[#allocation7 + $0x308] sm:$0xff] %v1890
    %2019 = vst [vmem:[#allocation7 + $0x310] sm:$0xff] %v1891
    %2020 = vst [vmem:[#allocation7 + $0x318] sm:$0xff] %v1892
    %2021 = vst [vmem:[#allocation7 + $0x320] sm:$0xff] %v1893
    %2022 = vst [vmem:[#allocation7 + $0x328] sm:$0xff] %v1894
    %2023 = vst [vmem:[#allocation7 + $0x330] sm:$0xff] %v1895
    %2024 = vst [vmem:[#allocation7 + $0x338] sm:$0xff] %v1896
    %2025 = vst [vmem:[#allocation7 + $0x340] sm:$0xff] %v1897
    %2026 = vst [vmem:[#allocation7 + $0x348] sm:$0xff] %v1898
    %2027 = vst [vmem:[#allocation7 + $0x350] sm:$0xff] %v1899
    %2028 = vst [vmem:[#allocation7 + $0x358] sm:$0xff] %v1900
    %2029 = vst [vmem:[#allocation7 + $0x360] sm:$0xff] %v1901
    %2030 = vst [vmem:[#allocation7 + $0x368] sm:$0xff] %v1902
    %2031 = vst [vmem:[#allocation7 + $0x370] sm:$0xff] %v1903
    %2032 = vst [vmem:[#allocation7 + $0x378] sm:$0xff] %v1904
    %2033 = vst [vmem:[#allocation7 + $0x380] sm:$0xff] %v1905
    %2034 = vst [vmem:[#allocation7 + $0x388] sm:$0xff] %v1906
    %2035 = vst [vmem:[#allocation7 + $0x390] sm:$0xff] %v1907
    %2036 = vst [vmem:[#allocation7 + $0x398] sm:$0xff] %v1908
    %2037 = vst [vmem:[#allocation7 + $0x3a0] sm:$0xff] %v1909
    %2038 = vst [vmem:[#allocation7 + $0x3a8] sm:$0xff] %v1910
    %2039 = vst [vmem:[#allocation7 + $0x3b0] sm:$0xff] %v1911
    %2040 = vst [vmem:[#allocation7 + $0x3b8] sm:$0xff] %v1912
    %2041 = vst [vmem:[#allocation7 + $0x3c0] sm:$0xff] %v1913
    %2042 = vst [vmem:[#allocation7 + $0x3c8] sm:$0xff] %v1914
    %2043 = vst [vmem:[#allocation7 + $0x3d0] sm:$0xff] %v1915
    %2044 = vst [vmem:[#allocation7 + $0x3d8] sm:$0xff] %v1916
    %2045 = vst [vmem:[#allocation7 + $0x3e0] sm:$0xff] %v1917
    %2046 = vst [vmem:[#allocation7 + $0x3e8] sm:$0xff] %v1918
    %2047 = vst [vmem:[#allocation7 + $0x3f0] sm:$0xff] %v1919
    %2048 = vst [vmem:[#allocation7 + $0x3f8] sm:$0xff] %v1920
    // Predicated region
    $region22: #{tpu_custom_call.1} parent=1 // pred_check
      _
    $region23: #{tpu_custom_call.1} parent=1 // pred_check_branch
      %2050 = sbr.rel (0) target = $region25
    $region24: #{tpu_custom_call.1} parent=1 // pred_region
      %s2052 = ssub.s32 16384, 16384
      %2053 = vsyncadd [#allocation4], %s2052
      %s2054 = sshll.u32 [#allocation7], 4
      %s2055 = int_to_ptr.vmem [resolvable:$true] %s2054
      %2060 = dma.vmem_to_hbm [thread:$0]  %s2055, 16384, %s2, [#allocation4], 512, 512, 32
    $region25: #{tpu_custom_call.1} parent=1 // pred_fallthru
      _
    // Predicated region
    $region26: #{tpu_custom_call.1} parent=1 // pred_check
      _
    $region27: #{tpu_custom_call.1} parent=1 // pred_check_branch
      %2062 = sbr.rel (0) target = $region29
    $region28: #{tpu_custom_call.1} parent=1 // pred_region
      %2063 = dma.done [#allocation4], 16384
    $region29: #{tpu_custom_call.1} parent=1 // pred_fallthru
      _
    %2064 = vsyncpa [#allocation3], 1
    %2065 = vsyncpa [#allocation6], 1
    %2066 = vsyncpa [#allocation4], 1

</llo_original>
